<compile_context>
chip_gen: v7x
topology: tpu7x:2x2x1
jax: 0.10.0
libtpu: 0.0.40
codegen_flags: <defaults>
</compile_context>

<pallas_src>
import functools
import math

import jax
import jax.numpy as jnp
from jax import lax
from jax.experimental import pallas as pl
from jax.experimental.pallas import tpu as pltpu

# Small-but-consistent sizes (constructor args of the module; heads fixed at 8).
DIM_IN = 128        # dim_in     (module default 256)
HIDDEN = 256        # hidden_dim (module default 1024)
NUM_HEADS = 8
HEAD_DIM = DIM_IN // NUM_HEADS
LN_EPS = 1e-5       # PyTorch nn.LayerNorm default eps
VEC_ROWS = 16       # rows of the packed bias/LayerNorm parameter block
VEC_W = 3 * DIM_IN  # width of the packed block (>= HIDDEN and >= DIM_IN)


def _layernorm(x, g, b):
    mu = jnp.mean(x, axis=-1, keepdims=True)
    xc = x - mu
    var = jnp.mean(xc * xc, axis=-1, keepdims=True)
    return xc * lax.rsqrt(var + LN_EPS) * g + b


def qim_kernel(x_ref, wqkv_ref, wo_ref, w1_ref, w2_ref, wf1_ref, wf2_ref,
               vec_ref, out_ref, *, n_batch):
    R, E = x_ref.shape                       # R = L * n_batch rows, row = l*n_batch + n
    H, Dh = NUM_HEADS, E // NUM_HEADS
    H1 = w1_ref.shape[1]
    f32, bf16 = jnp.float32, jnp.bfloat16

    x = x_ref[...]                           # (R, E) f32
    xb = x.astype(bf16)

    # Packed small parameters: one (VEC_ROWS, 3E) f32 block, all slices lane-aligned.
    vec = vec_ref[...]
    bqkv = vec[0:1, :]                       # (1, 3E); Q part pre-scaled by 1/sqrt(Dh)
    b1, bf1 = vec[1:2, :H1], vec[2:3, :H1]
    bo, b2, bf2 = vec[3:4, :E], vec[4:5, :E], vec[5:6, :E]
    ln1_g, ln1_b = vec[6:7, :E], vec[7:8, :E]
    ln2_g, ln2_b = vec[8:9, :E], vec[9:10, :E]
    lnf_g, lnf_b = vec[10:11, :E], vec[11:12, :E]

    # ---- fused QKV projection: one (R,E)@(E,3E) bf16 matmul, f32 accumulation ----
    qkv = jnp.dot(xb, wqkv_ref[...], preferred_element_type=f32) + bqkv   # (R, 3E)
    q = qkv[:, :E]                            # lane-aligned (multiple-of-128) slices
    k = qkv[:, E:2 * E]
    v = qkv[:, 2 * E:]

    # ---- head split: static lane slices stacked along a new leading head axis ----
    def heads(t):                             # (R, E) -> (H, R, Dh) bf16
        return jnp.stack([t[:, h * Dh:(h + 1) * Dh] for h in range(H)],
                         axis=0).astype(bf16)

    qh, kh, vh = heads(q), heads(k), heads(v)

    # ---- attention over all R rows per head; cross-batch pairs masked out ----
    ri = lax.broadcasted_iota(jnp.int32, (R, R), 0)
    rj = lax.broadcasted_iota(jnp.int32, (R, R), 1)
    neg = jnp.where((ri % n_batch) == (rj % n_batch), 0.0, -1e30).astype(f32)

    s = jnp.einsum('hqd,hkd->hqk', qh, kh, preferred_element_type=f32)    # (H, R, R)
    s = s + neg[None, :, :]
    s = s - jnp.max(s, axis=-1, keepdims=True)
    p = jnp.exp(s)
    p = p * pl.reciprocal(jnp.sum(p, axis=-1, keepdims=True), approx=True)
    o = jnp.einsum('hqk,hkd->hqd', p.astype(bf16), vh,
                   preferred_element_type=f32)                            # (H, R, Dh)

    # ---- merge heads back to lanes (h*Dh + d) and one fused K=E output projection ----
    o_flat = jnp.concatenate([o[h] for h in range(H)], axis=-1)           # (R, E)
    attn = jnp.dot(o_flat.astype(bf16), wo_ref[...],
                   preferred_element_type=f32) + bo                       # (R, E)

    # ---- tgt = norm1(x + attn) ----
    tgt = _layernorm(x + attn, ln1_g, ln1_b)

    # ---- FFN: linear2(relu(linear1(tgt))) + residual + norm2 ----
    h1 = jnp.maximum(jnp.dot(tgt.astype(bf16), w1_ref[...],
                             preferred_element_type=f32) + b1, 0.0)
    ff = jnp.dot(h1.astype(bf16), w2_ref[...], preferred_element_type=f32) + b2
    tgt = _layernorm(tgt + ff, ln2_g, ln2_b)

    # ---- feat FFN (residual from ORIGINAL input) + norm_feat ----
    hf = jnp.maximum(jnp.dot(tgt.astype(bf16), wf1_ref[...],
                             preferred_element_type=f32) + bf1, 0.0)
    feat = jnp.dot(hf.astype(bf16), wf2_ref[...], preferred_element_type=f32) + bf2
    out_ref[...] = _layernorm(x + feat, lnf_g, lnf_b)


def query_interaction_forward(x_lne, kp):
    """x_lne: (L, N, E) float32 (PyTorch MHA convention). kp: packed kernel params."""
    L, N, E = x_lne.shape
    R = L * N
    # Free contiguous reshape (no transpose / HBM round trip): rows ordered l*N + n.
    x2 = x_lne.reshape(R, E)

    kernel = functools.partial(qim_kernel, n_batch=N)
    const2 = lambda i: (0, 0)

    out = pl.pallas_call(
        kernel,
        # Shipped case (N=2, L=8): all sequences in one invocation, per the review.
        # For large N on v7x, tile the grid over batch groups (keep >= 2 steps so both
        # TensorCores get work) with a 3-D BlockSpec over the (L, N, E) layout.
        grid=(1,),
        in_specs=[
            pl.BlockSpec((R, E), const2),                 # x: all rows in one block
            pl.BlockSpec(kp["wqkv"].shape, const2),       # (E, 3E)      bf16
            pl.BlockSpec(kp["wo"].shape, const2),         # (E, E)       bf16
            pl.BlockSpec(kp["w1"].shape, const2),         # (E, HIDDEN)  bf16
            pl.BlockSpec(kp["w2"].shape, const2),         # (HIDDEN, E)  bf16
            pl.BlockSpec(kp["wf1"].shape, const2),        # (E, HIDDEN)  bf16
            pl.BlockSpec(kp["wf2"].shape, const2),        # (HIDDEN, E)  bf16
            pl.BlockSpec(kp["vec"].shape, const2),        # (16, 3E) f32 packed biases/LN
        ],
        out_specs=pl.BlockSpec((R, E), const2),
        out_shape=jax.ShapeDtypeStruct((R, E), jnp.float32),
        compiler_params=pltpu.CompilerParams(
            dimension_semantics=("arbitrary",)),
    )(x2, kp["wqkv"], kp["wo"], kp["w1"], kp["w2"], kp["wf1"], kp["wf2"], kp["vec"])

    return out.reshape(L, N, E)


def pack_params(p):
    """One-time host-side repack: fused (E,3E) QKV weight with 1/sqrt(Dh) folded into
    the Q columns, bf16 weight cast, and all tiny bias/LN vectors packed into one
    lane-dense f32 block (single DMA)."""
    E, H1, Dh = DIM_IN, HIDDEN, HEAD_DIM
    scale = 1.0 / math.sqrt(Dh)
    bf16 = jnp.bfloat16
    assert H1 <= VEC_W and E <= VEC_W

    wqkv = p["wqkv_t"]                                     # (E, 3E), columns [q|k|v]
    wqkv = jnp.concatenate([wqkv[:, :E] * scale, wqkv[:, E:]], axis=1)
    bqkv = p["bqkv"][0]                                    # (3E,)
    bqkv = jnp.concatenate([bqkv[:E] * scale, bqkv[E:]])

    vec = jnp.zeros((VEC_ROWS, VEC_W), jnp.float32)
    vec = vec.at[0, :].set(bqkv)
    vec = vec.at[1, :H1].set(p["b1"][0])
    vec = vec.at[2, :H1].set(p["bf1"][0])
    vec = vec.at[3, :E].set(p["bo"][0])
    vec = vec.at[4, :E].set(p["b2"][0])
    vec = vec.at[5, :E].set(p["bf2"][0])
    vec = vec.at[6, :E].set(p["ln1_g"][0])
    vec = vec.at[7, :E].set(p["ln1_b"][0])
    vec = vec.at[8, :E].set(p["ln2_g"][0])
    vec = vec.at[9, :E].set(p["ln2_b"][0])
    vec = vec.at[10, :E].set(p["lnf_g"][0])
    vec = vec.at[11, :E].set(p["lnf_b"][0])

    return dict(
        wqkv=wqkv.astype(bf16),
        wo=p["wo_t"].astype(bf16),
        w1=p["w1_t"].astype(bf16), w2=p["w2_t"].astype(bf16),
        wf1=p["wf1_t"].astype(bf16), wf2=p["wf2_t"].astype(bf16),
        vec=vec,
    )


def init_params(key):
    E, H1 = DIM_IN, HIDDEN
    ks = jax.random.split(key, 12)

    def w(k, shape, scale=0.05):
        return (jax.random.normal(k, shape, jnp.float32) * scale).astype(jnp.float32)

    return dict(
        wqkv_t=w(ks[0], (E, 3 * E)), bqkv=w(ks[1], (1, 3 * E), 0.02),
        wo_t=w(ks[2], (E, E)),       bo=w(ks[3], (1, E), 0.02),
        w1_t=w(ks[4], (E, H1)),      b1=w(ks[5], (1, H1), 0.02),
        w2_t=w(ks[6], (H1, E)),      b2=w(ks[7], (1, E), 0.02),
        wf1_t=w(ks[8], (E, H1)),     bf1=w(ks[9], (1, H1), 0.02),
        wf2_t=w(ks[10], (H1, E)),    bf2=w(ks[11], (1, E), 0.02),
        ln1_g=jnp.ones((1, E), jnp.float32), ln1_b=jnp.zeros((1, E), jnp.float32),
        ln2_g=jnp.ones((1, E), jnp.float32), ln2_b=jnp.zeros((1, E), jnp.float32),
        lnf_g=jnp.ones((1, E), jnp.float32), lnf_b=jnp.zeros((1, E), jnp.float32),
    )


def reference(x_lne, p):
    """Pure-JAX f32 reference mirroring the PyTorch forward, on (L, N, E)."""
    L, N, E = x_lne.shape
    H, Dh = NUM_HEADS, E // NUM_HEADS
    qkv = jnp.einsum("lne,ef->lnf", x_lne, p["wqkv_t"]) + p["bqkv"][0]
    q, k, v = qkv[..., :E], qkv[..., E:2 * E], qkv[..., 2 * E:]
    scale = 1.0 / math.sqrt(Dh)
    q4 = q.reshape(L, N, H, Dh) * scale
    k4 = k.reshape(L, N, H, Dh)
    v4 = v.reshape(L, N, H, Dh)
    s = jnp.einsum("lnhd,mnhd->nhlm", q4, k4)
    a = jax.nn.softmax(s, axis=-1)
    o = jnp.einsum("nhlm,mnhd->lnhd", a, v4).reshape(L, N, E)
    attn = o @ p["wo_t"] + p["bo"][0]

    def ln(x, g, b):
        mu = x.mean(-1, keepdims=True)
        var = ((x - mu) ** 2).mean(-1, keepdims=True)
        return (x - mu) / jnp.sqrt(var + LN_EPS) * g[0] + b[0]

    tgt = ln(x_lne + attn, p["ln1_g"], p["ln1_b"])
    ff = jnp.maximum(tgt @ p["w1_t"] + p["b1"][0], 0.0) @ p["w2_t"] + p["b2"][0]
    tgt = ln(tgt + ff, p["ln2_g"], p["ln2_b"])
    feat = jnp.maximum(tgt @ p["wf1_t"] + p["bf1"][0], 0.0) @ p["wf2_t"] + p["bf2"][0]
    return ln(x_lne + feat, p["lnf_g"], p["lnf_b"])


if __name__ == "__main__":
    L, N = 8, 2   # seq len, batch (PyTorch MHA convention: input is (L, N, E))
    key = jax.random.PRNGKey(0)
    k_param, k_x = jax.random.split(key)
    params = init_params(k_param)
    kparams = pack_params(params)
    x = jax.random.normal(k_x, (L, N, DIM_IN), jnp.float32)

    out = query_interaction_forward(x, kparams)
    out = jax.block_until_ready(out)

    ref = reference(x, params)
    assert out.shape == (L, N, DIM_IN)
    # Kernel matmuls run with bf16 operands (f32 accumulation); tolerance reflects that.
    assert jnp.allclose(out, ref, atol=2e-2, rtol=2e-2), float(jnp.max(jnp.abs(out - ref)))
    print("KERNEL_OK")
</pallas_src>

<mosaic_0001>
module attributes {stable_mosaic.version = 11 : i64} {
  func.func @qim_kernel(%arg0: i32, %arg1: memref<16x128xf32, #tpu.memory_space<vmem>>, %arg2: memref<128x384xbf16, #tpu.memory_space<vmem>>, %arg3: memref<128x128xbf16, #tpu.memory_space<vmem>>, %arg4: memref<128x256xbf16, #tpu.memory_space<vmem>>, %arg5: memref<256x128xbf16, #tpu.memory_space<vmem>>, %arg6: memref<128x256xbf16, #tpu.memory_space<vmem>>, %arg7: memref<256x128xbf16, #tpu.memory_space<vmem>>, %arg8: memref<16x384xf32, #tpu.memory_space<vmem>>, %arg9: memref<16x128xf32, #tpu.memory_space<vmem>>) attributes {dimension_semantics = [#tpu.dimension_semantics<arbitrary>], iteration_bounds = array<i64: 1>, scalar_prefetch = 0 : i64, scratch_operands = 0 : i64, tpu.core_type = #tpu.core_type<tc>, window_params = [{pipeline_mode = #tpu.pipeline_mode<synchronous>, transform_indices = @transform_0, window_bounds = array<i64: 16, 128>}, {pipeline_mode = #tpu.pipeline_mode<synchronous>, transform_indices = @transform_1, window_bounds = array<i64: 128, 384>}, {pipeline_mode = #tpu.pipeline_mode<synchronous>, transform_indices = @transform_2, window_bounds = array<i64: 128, 128>}, {pipeline_mode = #tpu.pipeline_mode<synchronous>, transform_indices = @transform_3, window_bounds = array<i64: 128, 256>}, {pipeline_mode = #tpu.pipeline_mode<synchronous>, transform_indices = @transform_4, window_bounds = array<i64: 256, 128>}, {pipeline_mode = #tpu.pipeline_mode<synchronous>, transform_indices = @transform_5, window_bounds = array<i64: 128, 256>}, {pipeline_mode = #tpu.pipeline_mode<synchronous>, transform_indices = @transform_6, window_bounds = array<i64: 256, 128>}, {pipeline_mode = #tpu.pipeline_mode<synchronous>, transform_indices = @transform_7, window_bounds = array<i64: 16, 384>}, {pipeline_mode = #tpu.pipeline_mode<synchronous>, transform_indices = @transform_8, window_bounds = array<i64: 16, 128>}]} {
    %c0 = arith.constant 0 : index
    %c0_0 = arith.constant 0 : index
    %0 = vector.load %arg1[%c0, %c0_0] : memref<16x128xf32, #tpu.memory_space<vmem>>, vector<16x128xf32>
    %1 = arith.truncf %0 : vector<16x128xf32> to vector<16x128xbf16>
    %c0_1 = arith.constant 0 : index
    %c0_2 = arith.constant 0 : index
    %2 = vector.load %arg8[%c0_1, %c0_2] : memref<16x384xf32, #tpu.memory_space<vmem>>, vector<16x384xf32>
    %3 = vector.extract_strided_slice %2 {offsets = [0, 0], sizes = [1, 384], strides = [1, 1]} : vector<16x384xf32> to vector<1x384xf32>
    %4 = vector.extract_strided_slice %2 {offsets = [1, 0], sizes = [1, 256], strides = [1, 1]} : vector<16x384xf32> to vector<1x256xf32>
    %5 = vector.extract_strided_slice %2 {offsets = [2, 0], sizes = [1, 256], strides = [1, 1]} : vector<16x384xf32> to vector<1x256xf32>
    %6 = vector.extract_strided_slice %2 {offsets = [3, 0], sizes = [1, 128], strides = [1, 1]} : vector<16x384xf32> to vector<1x128xf32>
    %7 = vector.extract_strided_slice %2 {offsets = [4, 0], sizes = [1, 128], strides = [1, 1]} : vector<16x384xf32> to vector<1x128xf32>
    %8 = vector.extract_strided_slice %2 {offsets = [5, 0], sizes = [1, 128], strides = [1, 1]} : vector<16x384xf32> to vector<1x128xf32>
    %9 = vector.extract_strided_slice %2 {offsets = [6, 0], sizes = [1, 128], strides = [1, 1]} : vector<16x384xf32> to vector<1x128xf32>
    %10 = vector.extract_strided_slice %2 {offsets = [7, 0], sizes = [1, 128], strides = [1, 1]} : vector<16x384xf32> to vector<1x128xf32>
    %11 = vector.extract_strided_slice %2 {offsets = [8, 0], sizes = [1, 128], strides = [1, 1]} : vector<16x384xf32> to vector<1x128xf32>
    %12 = vector.extract_strided_slice %2 {offsets = [9, 0], sizes = [1, 128], strides = [1, 1]} : vector<16x384xf32> to vector<1x128xf32>
    %13 = vector.extract_strided_slice %2 {offsets = [10, 0], sizes = [1, 128], strides = [1, 1]} : vector<16x384xf32> to vector<1x128xf32>
    %14 = vector.extract_strided_slice %2 {offsets = [11, 0], sizes = [1, 128], strides = [1, 1]} : vector<16x384xf32> to vector<1x128xf32>
    %c0_3 = arith.constant 0 : index
    %c0_4 = arith.constant 0 : index
    %15 = vector.load %arg2[%c0_3, %c0_4] : memref<128x384xbf16, #tpu.memory_space<vmem>>, vector<128x384xbf16>
    %cst = arith.constant dense<0.000000e+00> : vector<16x384xf32>
    %16 = tpu.matmul %1, %15, %cst {dimension_numbers = #tpu.dot_dimension_numbers<[1], [0], [0], [1], [0, 0, 1, 1], [], []>} : vector<16x128xbf16>, vector<128x384xbf16>, vector<16x384xf32> -> vector<16x384xf32>
    %17 = vector.broadcast %3 : vector<1x384xf32> to vector<16x384xf32>
    %18 = arith.addf %16, %17 : vector<16x384xf32>
    %19 = vector.extract_strided_slice %18 {offsets = [0, 0], sizes = [16, 128], strides = [1, 1]} : vector<16x384xf32> to vector<16x128xf32>
    %20 = vector.extract_strided_slice %18 {offsets = [0, 128], sizes = [16, 128], strides = [1, 1]} : vector<16x384xf32> to vector<16x128xf32>
    %21 = vector.extract_strided_slice %18 {offsets = [0, 256], sizes = [16, 128], strides = [1, 1]} : vector<16x384xf32> to vector<16x128xf32>
    %22 = vector.extract_strided_slice %19 {offsets = [0, 0], sizes = [16, 16], strides = [1, 1]} : vector<16x128xf32> to vector<16x16xf32>
    %23 = vector.extract_strided_slice %19 {offsets = [0, 16], sizes = [16, 16], strides = [1, 1]} : vector<16x128xf32> to vector<16x16xf32>
    %24 = vector.extract_strided_slice %19 {offsets = [0, 32], sizes = [16, 16], strides = [1, 1]} : vector<16x128xf32> to vector<16x16xf32>
    %25 = vector.extract_strided_slice %19 {offsets = [0, 48], sizes = [16, 16], strides = [1, 1]} : vector<16x128xf32> to vector<16x16xf32>
    %26 = vector.extract_strided_slice %19 {offsets = [0, 64], sizes = [16, 16], strides = [1, 1]} : vector<16x128xf32> to vector<16x16xf32>
    %27 = vector.extract_strided_slice %19 {offsets = [0, 80], sizes = [16, 16], strides = [1, 1]} : vector<16x128xf32> to vector<16x16xf32>
    %28 = vector.extract_strided_slice %19 {offsets = [0, 96], sizes = [16, 16], strides = [1, 1]} : vector<16x128xf32> to vector<16x16xf32>
    %29 = vector.extract_strided_slice %19 {offsets = [0, 112], sizes = [16, 16], strides = [1, 1]} : vector<16x128xf32> to vector<16x16xf32>
    %30 = vector.shape_cast %22 : vector<16x16xf32> to vector<1x16x16xf32>
    %31 = vector.shape_cast %23 : vector<16x16xf32> to vector<1x16x16xf32>
    %32 = vector.shape_cast %24 : vector<16x16xf32> to vector<1x16x16xf32>
    %33 = vector.shape_cast %25 : vector<16x16xf32> to vector<1x16x16xf32>
    %34 = vector.shape_cast %26 : vector<16x16xf32> to vector<1x16x16xf32>
    %35 = vector.shape_cast %27 : vector<16x16xf32> to vector<1x16x16xf32>
    %36 = vector.shape_cast %28 : vector<16x16xf32> to vector<1x16x16xf32>
    %37 = vector.shape_cast %29 : vector<16x16xf32> to vector<1x16x16xf32>
    %38 = tpu.concatenate %30, %31, %32, %33, %34, %35, %36, %37 in 0 : vector<1x16x16xf32>, vector<1x16x16xf32>, vector<1x16x16xf32>, vector<1x16x16xf32>, vector<1x16x16xf32>, vector<1x16x16xf32>, vector<1x16x16xf32>, vector<1x16x16xf32> -> vector<8x16x16xf32>
    %39 = arith.truncf %38 : vector<8x16x16xf32> to vector<8x16x16xbf16>
    %40 = vector.extract_strided_slice %20 {offsets = [0, 0], sizes = [16, 16], strides = [1, 1]} : vector<16x128xf32> to vector<16x16xf32>
    %41 = vector.extract_strided_slice %20 {offsets = [0, 16], sizes = [16, 16], strides = [1, 1]} : vector<16x128xf32> to vector<16x16xf32>
    %42 = vector.extract_strided_slice %20 {offsets = [0, 32], sizes = [16, 16], strides = [1, 1]} : vector<16x128xf32> to vector<16x16xf32>
    %43 = vector.extract_strided_slice %20 {offsets = [0, 48], sizes = [16, 16], strides = [1, 1]} : vector<16x128xf32> to vector<16x16xf32>
    %44 = vector.extract_strided_slice %20 {offsets = [0, 64], sizes = [16, 16], strides = [1, 1]} : vector<16x128xf32> to vector<16x16xf32>
    %45 = vector.extract_strided_slice %20 {offsets = [0, 80], sizes = [16, 16], strides = [1, 1]} : vector<16x128xf32> to vector<16x16xf32>
    %46 = vector.extract_strided_slice %20 {offsets = [0, 96], sizes = [16, 16], strides = [1, 1]} : vector<16x128xf32> to vector<16x16xf32>
    %47 = vector.extract_strided_slice %20 {offsets = [0, 112], sizes = [16, 16], strides = [1, 1]} : vector<16x128xf32> to vector<16x16xf32>
    %48 = vector.shape_cast %40 : vector<16x16xf32> to vector<1x16x16xf32>
    %49 = vector.shape_cast %41 : vector<16x16xf32> to vector<1x16x16xf32>
    %50 = vector.shape_cast %42 : vector<16x16xf32> to vector<1x16x16xf32>
    %51 = vector.shape_cast %43 : vector<16x16xf32> to vector<1x16x16xf32>
    %52 = vector.shape_cast %44 : vector<16x16xf32> to vector<1x16x16xf32>
    %53 = vector.shape_cast %45 : vector<16x16xf32> to vector<1x16x16xf32>
    %54 = vector.shape_cast %46 : vector<16x16xf32> to vector<1x16x16xf32>
    %55 = vector.shape_cast %47 : vector<16x16xf32> to vector<1x16x16xf32>
    %56 = tpu.concatenate %48, %49, %50, %51, %52, %53, %54, %55 in 0 : vector<1x16x16xf32>, vector<1x16x16xf32>, vector<1x16x16xf32>, vector<1x16x16xf32>, vector<1x16x16xf32>, vector<1x16x16xf32>, vector<1x16x16xf32>, vector<1x16x16xf32> -> vector<8x16x16xf32>
    %57 = arith.truncf %56 : vector<8x16x16xf32> to vector<8x16x16xbf16>
    %58 = vector.extract_strided_slice %21 {offsets = [0, 0], sizes = [16, 16], strides = [1, 1]} : vector<16x128xf32> to vector<16x16xf32>
    %59 = vector.extract_strided_slice %21 {offsets = [0, 16], sizes = [16, 16], strides = [1, 1]} : vector<16x128xf32> to vector<16x16xf32>
    %60 = vector.extract_strided_slice %21 {offsets = [0, 32], sizes = [16, 16], strides = [1, 1]} : vector<16x128xf32> to vector<16x16xf32>
    %61 = vector.extract_strided_slice %21 {offsets = [0, 48], sizes = [16, 16], strides = [1, 1]} : vector<16x128xf32> to vector<16x16xf32>
    %62 = vector.extract_strided_slice %21 {offsets = [0, 64], sizes = [16, 16], strides = [1, 1]} : vector<16x128xf32> to vector<16x16xf32>
    %63 = vector.extract_strided_slice %21 {offsets = [0, 80], sizes = [16, 16], strides = [1, 1]} : vector<16x128xf32> to vector<16x16xf32>
    %64 = vector.extract_strided_slice %21 {offsets = [0, 96], sizes = [16, 16], strides = [1, 1]} : vector<16x128xf32> to vector<16x16xf32>
    %65 = vector.extract_strided_slice %21 {offsets = [0, 112], sizes = [16, 16], strides = [1, 1]} : vector<16x128xf32> to vector<16x16xf32>
    %66 = vector.shape_cast %58 : vector<16x16xf32> to vector<1x16x16xf32>
    %67 = vector.shape_cast %59 : vector<16x16xf32> to vector<1x16x16xf32>
    %68 = vector.shape_cast %60 : vector<16x16xf32> to vector<1x16x16xf32>
    %69 = vector.shape_cast %61 : vector<16x16xf32> to vector<1x16x16xf32>
    %70 = vector.shape_cast %62 : vector<16x16xf32> to vector<1x16x16xf32>
    %71 = vector.shape_cast %63 : vector<16x16xf32> to vector<1x16x16xf32>
    %72 = vector.shape_cast %64 : vector<16x16xf32> to vector<1x16x16xf32>
    %73 = vector.shape_cast %65 : vector<16x16xf32> to vector<1x16x16xf32>
    %74 = tpu.concatenate %66, %67, %68, %69, %70, %71, %72, %73 in 0 : vector<1x16x16xf32>, vector<1x16x16xf32>, vector<1x16x16xf32>, vector<1x16x16xf32>, vector<1x16x16xf32>, vector<1x16x16xf32>, vector<1x16x16xf32>, vector<1x16x16xf32> -> vector<8x16x16xf32>
    %75 = arith.truncf %74 : vector<8x16x16xf32> to vector<8x16x16xbf16>
    %76 = tpu.iota {dimensions = array<i32: 0>} : vector<16x16xi32>
    %77 = tpu.iota {dimensions = array<i32: 1>} : vector<16x16xi32>
    %c2_i32 = arith.constant 2 : i32
    %c0_i32 = arith.constant 0 : i32
    %78 = arith.cmpi eq, %c2_i32, %c0_i32 : i32
    %c1_i32 = arith.constant 1 : i32
    %79 = arith.select %78, %c1_i32, %c2_i32 : i32
    %80 = vector.broadcast %79 : i32 to vector<16x16xi32>
    %81 = arith.remsi %76, %80 : vector<16x16xi32>
    %c0_i32_5 = arith.constant 0 : i32
    %82 = vector.broadcast %c0_i32_5 : i32 to vector<16x16xi32>
    %83 = arith.cmpi ne, %81, %82 : vector<16x16xi32>
    %c0_i32_6 = arith.constant 0 : i32
    %84 = vector.broadcast %c0_i32_6 : i32 to vector<16x16xi32>
    %85 = arith.cmpi slt, %81, %84 : vector<16x16xi32>
    %c0_i32_7 = arith.constant 0 : i32
    %86 = arith.cmpi slt, %79, %c0_i32_7 : i32
    %87 = vector.broadcast %86 : i1 to vector<16x16xi1>
    %88 = vector.broadcast %87 : vector<16x16xi1> to vector<16x16xi1>
    %89 = arith.xori %85, %88 : vector<16x16xi1>
    %90 = arith.andi %89, %83 : vector<16x16xi1>
    %91 = vector.broadcast %79 : i32 to vector<16x16xi32>
    %92 = arith.addi %81, %91 : vector<16x16xi32>
    %93 = arith.select %90, %92, %81 : vector<16x16xi1>, vector<16x16xi32>
    %c2_i32_8 = arith.constant 2 : i32
    %c0_i32_9 = arith.constant 0 : i32
    %94 = arith.cmpi eq, %c2_i32_8, %c0_i32_9 : i32
    %c1_i32_10 = arith.constant 1 : i32
    %95 = arith.select %94, %c1_i32_10, %c2_i32_8 : i32
    %96 = vector.broadcast %95 : i32 to vector<16x16xi32>
    %97 = arith.remsi %77, %96 : vector<16x16xi32>
    %c0_i32_11 = arith.constant 0 : i32
    %98 = vector.broadcast %c0_i32_11 : i32 to vector<16x16xi32>
    %99 = arith.cmpi ne, %97, %98 : vector<16x16xi32>
    %c0_i32_12 = arith.constant 0 : i32
    %100 = vector.broadcast %c0_i32_12 : i32 to vector<16x16xi32>
    %101 = arith.cmpi slt, %97, %100 : vector<16x16xi32>
    %c0_i32_13 = arith.constant 0 : i32
    %102 = arith.cmpi slt, %95, %c0_i32_13 : i32
    %103 = vector.broadcast %102 : i1 to vector<16x16xi1>
    %104 = vector.broadcast %103 : vector<16x16xi1> to vector<16x16xi1>
    %105 = arith.xori %101, %104 : vector<16x16xi1>
    %106 = arith.andi %105, %99 : vector<16x16xi1>
    %107 = vector.broadcast %95 : i32 to vector<16x16xi32>
    %108 = arith.addi %97, %107 : vector<16x16xi32>
    %109 = arith.select %106, %108, %97 : vector<16x16xi1>, vector<16x16xi32>
    %110 = arith.cmpi eq, %93, %109 : vector<16x16xi32>
    %cst_14 = arith.constant 0.000000e+00 : f32
    %cst_15 = arith.constant -1.000000e+30 : f32
    %111 = vector.broadcast %cst_14 : f32 to vector<16x16xf32>
    %112 = vector.broadcast %cst_15 : f32 to vector<16x16xf32>
    %113 = arith.select %110, %111, %112 : vector<16x16xi1>, vector<16x16xf32>
    "tpu.trace_start"() <{level = 10 : i32, message = "hqd,hkd->hqk"}> : () -> ()
    %cst_16 = arith.constant dense<0.000000e+00> : vector<8x16x16xf32>
    %114 = tpu.matmul %39, %57, %cst_16 {dimension_numbers = #tpu.dot_dimension_numbers<[2], [2], [1], [1], [0, 0, 0, 1, 1, 1], [0], [0]>} : vector<8x16x16xbf16>, vector<8x16x16xbf16>, vector<8x16x16xf32> -> vector<8x16x16xf32>
    "tpu.trace_stop"() : () -> ()
    %115 = vector.shape_cast %113 : vector<16x16xf32> to vector<1x16x16xf32>
    %116 = vector.broadcast %115 : vector<1x16x16xf32> to vector<8x16x16xf32>
    %117 = arith.addf %114, %116 : vector<8x16x16xf32>
    %cst_17 = arith.constant dense<0xFF800000> : vector<8x16xf32>
    %118 = vector.multi_reduction <maximumf>, %117, %cst_17 [2] : vector<8x16x16xf32> to vector<8x16xf32>
    %119 = vector.shape_cast %118 : vector<8x16xf32> to vector<8x16x1xf32>
    %120 = vector.broadcast %119 : vector<8x16x1xf32> to vector<8x16x16xf32>
    %121 = arith.subf %117, %120 : vector<8x16x16xf32>
    %122 = math.exp %121 : vector<8x16x16xf32>
    %cst_18 = arith.constant dense<0.000000e+00> : vector<8x16xf32>
    %123 = vector.multi_reduction <add>, %122, %cst_18 [2] : vector<8x16x16xf32> to vector<8x16xf32>
    %124 = vector.shape_cast %123 : vector<8x16xf32> to vector<8x16x1xf32>
    %125 = tpu.reciprocal %124 {approx = true} : vector<8x16x1xf32> -> vector<8x16x1xf32>
    %126 = vector.broadcast %125 : vector<8x16x1xf32> to vector<8x16x16xf32>
    %127 = arith.mulf %122, %126 : vector<8x16x16xf32>
    %128 = arith.truncf %127 : vector<8x16x16xf32> to vector<8x16x16xbf16>
    "tpu.trace_start"() <{level = 10 : i32, message = "hqk,hkd->hqd"}> : () -> ()
    %cst_19 = arith.constant dense<0.000000e+00> : vector<8x16x16xf32>
    %129 = tpu.matmul %128, %75, %cst_19 {dimension_numbers = #tpu.dot_dimension_numbers<[2], [1], [1], [2], [0, 0, 0, 1, 1, 2], [0], [0]>} : vector<8x16x16xbf16>, vector<8x16x16xbf16>, vector<8x16x16xf32> -> vector<8x16x16xf32>
    "tpu.trace_stop"() : () -> ()
    %130 = vector.extract_strided_slice %129 {offsets = [0, 0, 0], sizes = [1, 16, 16], strides = [1, 1, 1]} : vector<8x16x16xf32> to vector<1x16x16xf32>
    %131 = vector.shape_cast %130 : vector<1x16x16xf32> to vector<16x16xf32>
    %132 = vector.extract_strided_slice %129 {offsets = [1, 0, 0], sizes = [1, 16, 16], strides = [1, 1, 1]} : vector<8x16x16xf32> to vector<1x16x16xf32>
    %133 = vector.shape_cast %132 : vector<1x16x16xf32> to vector<16x16xf32>
    %134 = vector.extract_strided_slice %129 {offsets = [2, 0, 0], sizes = [1, 16, 16], strides = [1, 1, 1]} : vector<8x16x16xf32> to vector<1x16x16xf32>
    %135 = vector.shape_cast %134 : vector<1x16x16xf32> to vector<16x16xf32>
    %136 = vector.extract_strided_slice %129 {offsets = [3, 0, 0], sizes = [1, 16, 16], strides = [1, 1, 1]} : vector<8x16x16xf32> to vector<1x16x16xf32>
    %137 = vector.shape_cast %136 : vector<1x16x16xf32> to vector<16x16xf32>
    %138 = vector.extract_strided_slice %129 {offsets = [4, 0, 0], sizes = [1, 16, 16], strides = [1, 1, 1]} : vector<8x16x16xf32> to vector<1x16x16xf32>
    %139 = vector.shape_cast %138 : vector<1x16x16xf32> to vector<16x16xf32>
    %140 = vector.extract_strided_slice %129 {offsets = [5, 0, 0], sizes = [1, 16, 16], strides = [1, 1, 1]} : vector<8x16x16xf32> to vector<1x16x16xf32>
    %141 = vector.shape_cast %140 : vector<1x16x16xf32> to vector<16x16xf32>
    %142 = vector.extract_strided_slice %129 {offsets = [6, 0, 0], sizes = [1, 16, 16], strides = [1, 1, 1]} : vector<8x16x16xf32> to vector<1x16x16xf32>
    %143 = vector.shape_cast %142 : vector<1x16x16xf32> to vector<16x16xf32>
    %144 = vector.extract_strided_slice %129 {offsets = [7, 0, 0], sizes = [1, 16, 16], strides = [1, 1, 1]} : vector<8x16x16xf32> to vector<1x16x16xf32>
    %145 = vector.shape_cast %144 : vector<1x16x16xf32> to vector<16x16xf32>
    %146 = tpu.concatenate %131, %133, %135, %137, %139, %141, %143, %145 in 1 : vector<16x16xf32>, vector<16x16xf32>, vector<16x16xf32>, vector<16x16xf32>, vector<16x16xf32>, vector<16x16xf32>, vector<16x16xf32>, vector<16x16xf32> -> vector<16x128xf32>
    %147 = arith.truncf %146 : vector<16x128xf32> to vector<16x128xbf16>
    %c0_20 = arith.constant 0 : index
    %c0_21 = arith.constant 0 : index
    %148 = vector.load %arg3[%c0_20, %c0_21] : memref<128x128xbf16, #tpu.memory_space<vmem>>, vector<128x128xbf16>
    %cst_22 = arith.constant dense<0.000000e+00> : vector<16x128xf32>
    %149 = tpu.matmul %147, %148, %cst_22 {dimension_numbers = #tpu.dot_dimension_numbers<[1], [0], [0], [1], [0, 0, 1, 1], [], []>} : vector<16x128xbf16>, vector<128x128xbf16>, vector<16x128xf32> -> vector<16x128xf32>
    %150 = vector.broadcast %6 : vector<1x128xf32> to vector<16x128xf32>
    %151 = arith.addf %149, %150 : vector<16x128xf32>
    %152 = arith.addf %0, %151 : vector<16x128xf32>
    %cst_23 = arith.constant dense<0.000000e+00> : vector<16xf32>
    %153 = vector.multi_reduction <add>, %152, %cst_23 [1] : vector<16x128xf32> to vector<16xf32>
    %154 = vector.shape_cast %153 : vector<16xf32> to vector<16x1xf32>
    %cst_24 = arith.constant 1.280000e+02 : f32
    %155 = vector.broadcast %cst_24 : f32 to vector<16x1xf32>
    %156 = arith.divf %154, %155 : vector<16x1xf32>
    %157 = vector.broadcast %156 : vector<16x1xf32> to vector<16x128xf32>
    %158 = arith.subf %152, %157 : vector<16x128xf32>
    %159 = arith.mulf %158, %158 : vector<16x128xf32>
    %cst_25 = arith.constant dense<0.000000e+00> : vector<16xf32>
    %160 = vector.multi_reduction <add>, %159, %cst_25 [1] : vector<16x128xf32> to vector<16xf32>
    %161 = vector.shape_cast %160 : vector<16xf32> to vector<16x1xf32>
    %cst_26 = arith.constant 1.280000e+02 : f32
    %162 = vector.broadcast %cst_26 : f32 to vector<16x1xf32>
    %163 = arith.divf %161, %162 : vector<16x1xf32>
    %cst_27 = arith.constant 9.99999974E-6 : f32
    %164 = vector.broadcast %cst_27 : f32 to vector<16x1xf32>
    %165 = arith.addf %163, %164 : vector<16x1xf32>
    %166 = math.rsqrt %165 : vector<16x1xf32>
    %167 = vector.broadcast %166 : vector<16x1xf32> to vector<16x128xf32>
    %168 = arith.mulf %158, %167 : vector<16x128xf32>
    %169 = vector.broadcast %9 : vector<1x128xf32> to vector<16x128xf32>
    %170 = arith.mulf %168, %169 : vector<16x128xf32>
    %171 = vector.broadcast %10 : vector<1x128xf32> to vector<16x128xf32>
    %172 = arith.addf %170, %171 : vector<16x128xf32>
    %173 = arith.truncf %172 : vector<16x128xf32> to vector<16x128xbf16>
    %c0_28 = arith.constant 0 : index
    %c0_29 = arith.constant 0 : index
    %174 = vector.load %arg4[%c0_28, %c0_29] : memref<128x256xbf16, #tpu.memory_space<vmem>>, vector<128x256xbf16>
    %cst_30 = arith.constant dense<0.000000e+00> : vector<16x256xf32>
    %175 = tpu.matmul %173, %174, %cst_30 {dimension_numbers = #tpu.dot_dimension_numbers<[1], [0], [0], [1], [0, 0, 1, 1], [], []>} : vector<16x128xbf16>, vector<128x256xbf16>, vector<16x256xf32> -> vector<16x256xf32>
    %176 = vector.broadcast %4 : vector<1x256xf32> to vector<16x256xf32>
    %177 = arith.addf %175, %176 : vector<16x256xf32>
    %cst_31 = arith.constant 0.000000e+00 : f32
    %178 = vector.broadcast %cst_31 : f32 to vector<16x256xf32>
    %179 = arith.maximumf %177, %178 : vector<16x256xf32>
    %180 = arith.truncf %179 : vector<16x256xf32> to vector<16x256xbf16>
    %c0_32 = arith.constant 0 : index
    %c0_33 = arith.constant 0 : index
    %181 = vector.load %arg5[%c0_32, %c0_33] : memref<256x128xbf16, #tpu.memory_space<vmem>>, vector<256x128xbf16>
    %cst_34 = arith.constant dense<0.000000e+00> : vector<16x128xf32>
    %182 = tpu.matmul %180, %181, %cst_34 {dimension_numbers = #tpu.dot_dimension_numbers<[1], [0], [0], [1], [0, 0, 1, 1], [], []>} : vector<16x256xbf16>, vector<256x128xbf16>, vector<16x128xf32> -> vector<16x128xf32>
    %183 = vector.broadcast %7 : vector<1x128xf32> to vector<16x128xf32>
    %184 = arith.addf %182, %183 : vector<16x128xf32>
    %185 = arith.addf %172, %184 : vector<16x128xf32>
    %cst_35 = arith.constant dense<0.000000e+00> : vector<16xf32>
    %186 = vector.multi_reduction <add>, %185, %cst_35 [1] : vector<16x128xf32> to vector<16xf32>
    %187 = vector.shape_cast %186 : vector<16xf32> to vector<16x1xf32>
    %cst_36 = arith.constant 1.280000e+02 : f32
    %188 = vector.broadcast %cst_36 : f32 to vector<16x1xf32>
    %189 = arith.divf %187, %188 : vector<16x1xf32>
    %190 = vector.broadcast %189 : vector<16x1xf32> to vector<16x128xf32>
    %191 = arith.subf %185, %190 : vector<16x128xf32>
    %192 = arith.mulf %191, %191 : vector<16x128xf32>
    %cst_37 = arith.constant dense<0.000000e+00> : vector<16xf32>
    %193 = vector.multi_reduction <add>, %192, %cst_37 [1] : vector<16x128xf32> to vector<16xf32>
    %194 = vector.shape_cast %193 : vector<16xf32> to vector<16x1xf32>
    %cst_38 = arith.constant 1.280000e+02 : f32
    %195 = vector.broadcast %cst_38 : f32 to vector<16x1xf32>
    %196 = arith.divf %194, %195 : vector<16x1xf32>
    %cst_39 = arith.constant 9.99999974E-6 : f32
    %197 = vector.broadcast %cst_39 : f32 to vector<16x1xf32>
    %198 = arith.addf %196, %197 : vector<16x1xf32>
    %199 = math.rsqrt %198 : vector<16x1xf32>
    %200 = vector.broadcast %199 : vector<16x1xf32> to vector<16x128xf32>
    %201 = arith.mulf %191, %200 : vector<16x128xf32>
    %202 = vector.broadcast %11 : vector<1x128xf32> to vector<16x128xf32>
    %203 = arith.mulf %201, %202 : vector<16x128xf32>
    %204 = vector.broadcast %12 : vector<1x128xf32> to vector<16x128xf32>
    %205 = arith.addf %203, %204 : vector<16x128xf32>
    %206 = arith.truncf %205 : vector<16x128xf32> to vector<16x128xbf16>
    %c0_40 = arith.constant 0 : index
    %c0_41 = arith.constant 0 : index
    %207 = vector.load %arg6[%c0_40, %c0_41] : memref<128x256xbf16, #tpu.memory_space<vmem>>, vector<128x256xbf16>
    %cst_42 = arith.constant dense<0.000000e+00> : vector<16x256xf32>
    %208 = tpu.matmul %206, %207, %cst_42 {dimension_numbers = #tpu.dot_dimension_numbers<[1], [0], [0], [1], [0, 0, 1, 1], [], []>} : vector<16x128xbf16>, vector<128x256xbf16>, vector<16x256xf32> -> vector<16x256xf32>
    %209 = vector.broadcast %5 : vector<1x256xf32> to vector<16x256xf32>
    %210 = arith.addf %208, %209 : vector<16x256xf32>
    %cst_43 = arith.constant 0.000000e+00 : f32
    %211 = vector.broadcast %cst_43 : f32 to vector<16x256xf32>
    %212 = arith.maximumf %210, %211 : vector<16x256xf32>
    %213 = arith.truncf %212 : vector<16x256xf32> to vector<16x256xbf16>
    %c0_44 = arith.constant 0 : index
    %c0_45 = arith.constant 0 : index
    %214 = vector.load %arg7[%c0_44, %c0_45] : memref<256x128xbf16, #tpu.memory_space<vmem>>, vector<256x128xbf16>
    %cst_46 = arith.constant dense<0.000000e+00> : vector<16x128xf32>
    %215 = tpu.matmul %213, %214, %cst_46 {dimension_numbers = #tpu.dot_dimension_numbers<[1], [0], [0], [1], [0, 0, 1, 1], [], []>} : vector<16x256xbf16>, vector<256x128xbf16>, vector<16x128xf32> -> vector<16x128xf32>
    %216 = vector.broadcast %8 : vector<1x128xf32> to vector<16x128xf32>
    %217 = arith.addf %215, %216 : vector<16x128xf32>
    %218 = arith.addf %0, %217 : vector<16x128xf32>
    %cst_47 = arith.constant dense<0.000000e+00> : vector<16xf32>
    %219 = vector.multi_reduction <add>, %218, %cst_47 [1] : vector<16x128xf32> to vector<16xf32>
    %220 = vector.shape_cast %219 : vector<16xf32> to vector<16x1xf32>
    %cst_48 = arith.constant 1.280000e+02 : f32
    %221 = vector.broadcast %cst_48 : f32 to vector<16x1xf32>
    %222 = arith.divf %220, %221 : vector<16x1xf32>
    %223 = vector.broadcast %222 : vector<16x1xf32> to vector<16x128xf32>
    %224 = arith.subf %218, %223 : vector<16x128xf32>
    %225 = arith.mulf %224, %224 : vector<16x128xf32>
    %cst_49 = arith.constant dense<0.000000e+00> : vector<16xf32>
    %226 = vector.multi_reduction <add>, %225, %cst_49 [1] : vector<16x128xf32> to vector<16xf32>
    %227 = vector.shape_cast %226 : vector<16xf32> to vector<16x1xf32>
    %cst_50 = arith.constant 1.280000e+02 : f32
    %228 = vector.broadcast %cst_50 : f32 to vector<16x1xf32>
    %229 = arith.divf %227, %228 : vector<16x1xf32>
    %cst_51 = arith.constant 9.99999974E-6 : f32
    %230 = vector.broadcast %cst_51 : f32 to vector<16x1xf32>
    %231 = arith.addf %229, %230 : vector<16x1xf32>
    %232 = math.rsqrt %231 : vector<16x1xf32>
    %233 = vector.broadcast %232 : vector<16x1xf32> to vector<16x128xf32>
    %234 = arith.mulf %224, %233 : vector<16x128xf32>
    %235 = vector.broadcast %13 : vector<1x128xf32> to vector<16x128xf32>
    %236 = arith.mulf %234, %235 : vector<16x128xf32>
    %237 = vector.broadcast %14 : vector<1x128xf32> to vector<16x128xf32>
    %238 = arith.addf %236, %237 : vector<16x128xf32>
    %c0_52 = arith.constant 0 : index
    %c0_53 = arith.constant 0 : index
    %239 = vector.load %arg9[%c0_52, %c0_53] : memref<16x128xf32, #tpu.memory_space<vmem>>, vector<16x128xf32>
    tpu.vector_store %arg9[%c0_52, %c0_53], %238 {strides = array<i32>} : memref<16x128xf32, #tpu.memory_space<vmem>>, vector<16x128xf32>,
    return
  }
  func.func @transform_0(%arg0: i32) -> (i32, i32) {
    %c0_i32 = arith.constant 0 : i32
    %c0_i32_0 = arith.constant 0 : i32
    %c0_i32_1 = arith.constant 0 : i32
    return %c0_i32, %c0_i32_0 : i32, i32
  }
  func.func @transform_1(%arg0: i32) -> (i32, i32) {
    %c0_i32 = arith.constant 0 : i32
    %c0_i32_0 = arith.constant 0 : i32
    %c0_i32_1 = arith.constant 0 : i32
    return %c0_i32, %c0_i32_0 : i32, i32
  }
  func.func @transform_2(%arg0: i32) -> (i32, i32) {
    %c0_i32 = arith.constant 0 : i32
    %c0_i32_0 = arith.constant 0 : i32
    %c0_i32_1 = arith.constant 0 : i32
    return %c0_i32, %c0_i32_0 : i32, i32
  }
  func.func @transform_3(%arg0: i32) -> (i32, i32) {
    %c0_i32 = arith.constant 0 : i32
    %c0_i32_0 = arith.constant 0 : i32
    %c0_i32_1 = arith.constant 0 : i32
    return %c0_i32, %c0_i32_0 : i32, i32
  }
  func.func @transform_4(%arg0: i32) -> (i32, i32) {
    %c0_i32 = arith.constant 0 : i32
    %c0_i32_0 = arith.constant 0 : i32
    %c0_i32_1 = arith.constant 0 : i32
    return %c0_i32, %c0_i32_0 : i32, i32
  }
  func.func @transform_5(%arg0: i32) -> (i32, i32) {
    %c0_i32 = arith.constant 0 : i32
    %c0_i32_0 = arith.constant 0 : i32
    %c0_i32_1 = arith.constant 0 : i32
    return %c0_i32, %c0_i32_0 : i32, i32
  }
  func.func @transform_6(%arg0: i32) -> (i32, i32) {
    %c0_i32 = arith.constant 0 : i32
    %c0_i32_0 = arith.constant 0 : i32
    %c0_i32_1 = arith.constant 0 : i32
    return %c0_i32, %c0_i32_0 : i32, i32
  }
  func.func @transform_7(%arg0: i32) -> (i32, i32) {
    %c0_i32 = arith.constant 0 : i32
    %c0_i32_0 = arith.constant 0 : i32
    %c0_i32_1 = arith.constant 0 : i32
    return %c0_i32, %c0_i32_0 : i32, i32
  }
  func.func @transform_8(%arg0: i32) -> (i32, i32) {
    %c0_i32 = arith.constant 0 : i32
    %c0_i32_0 = arith.constant 0 : i32
    %c0_i32_1 = arith.constant 0 : i32
    return %c0_i32, %c0_i32_0 : i32, i32
  }
}

</mosaic_0001>

<llo_original>
// kernel: tpu_custom_call.1
$region0: #{tpu_custom_call.1}
  #allocation0 [shape = 'u32[]', space=smem, size = 0x4, offset = 0x4, fixed_abs, tag = 'smem constant byte address 0x4 - core index']
  #allocation1 [shape = 'u32[144,128]{1,0:T(1,128)}', space=vmem, size = 0x12000, scoped, tag = 'internal scratch']
  %s0 = inlined_call_operand.hbm [shape: f32[16,128], index: 0, kind: input, shape index: {}]
  %s1 = inlined_call_operand.hbm [shape: bf16[128,384], index: 1, kind: input, shape index: {}]
  %s2 = inlined_call_operand.hbm [shape: bf16[128,128], index: 2, kind: input, shape index: {}]
  %s3 = inlined_call_operand.hbm [shape: bf16[128,256], index: 3, kind: input, shape index: {}]
  %s4 = inlined_call_operand.hbm [shape: bf16[256,128], index: 4, kind: input, shape index: {}]
  %s5 = inlined_call_operand.hbm [shape: bf16[128,256], index: 5, kind: input, shape index: {}]
  %s6 = inlined_call_operand.hbm [shape: bf16[256,128], index: 6, kind: input, shape index: {}]
  %s7 = inlined_call_operand.hbm [shape: f32[16,384], index: 7, kind: input, shape index: {}]
  %s8 = inlined_call_operand.hbm [shape: f32[16,128], index: 8, kind: output, shape index: {}]
  %s9 = sld [smem:[#allocation0]]
  $region74: #{tpu_custom_call.1} parent=0
    _
  %s11 = ssub.s32 1, %s9
  %s12 = scalar_select 0, %s11, %s9
  $region1: #{tpu_custom_call.1} parent=0
    #allocation2 [shape = 'u8[8192]{0}', space=vmem, size = 0x2000, scoped, tag = 'input window, operand 0, single buffered']
    #allocation3 [shape = 's32[1]{0}', space=sflag, size = 0x4, scoped, tag = 'scoped memory for tpu_custom_call.1']
    #allocation4 [shape = 's32[1]{0}', space=sflag, size = 0x4, scoped, tag = 'scoped memory for tpu_custom_call.1']
    #allocation5 [shape = 'u8[98304]{0}', space=vmem, size = 0x18000, scoped, tag = 'input window, operand 1, single buffered']
    #allocation6 [shape = 's32[1]{0}', space=sflag, size = 0x4, scoped, tag = 'scoped memory for tpu_custom_call.1']
    #allocation7 [shape = 'u8[32768]{0}', space=vmem, size = 0x8000, scoped, tag = 'input window, operand 2, single buffered']
    #allocation8 [shape = 'u8[65536]{0}', space=vmem, size = 0x10000, scoped, tag = 'input window, operand 3, single buffered']
    #allocation9 [shape = 's32[1]{0}', space=sflag, size = 0x4, scoped, tag = 'scoped memory for tpu_custom_call.1']
    #allocation10 [shape = 'u8[65536]{0}', space=vmem, size = 0x10000, scoped, tag = 'input window, operand 4, single buffered']
    #allocation11 [shape = 'u8[65536]{0}', space=vmem, size = 0x10000, scoped, tag = 'input window, operand 5, single buffered']
    #allocation12 [shape = 's32[1]{0}', space=sflag, size = 0x4, scoped, tag = 'scoped memory for tpu_custom_call.1']
    #allocation13 [shape = 'u8[65536]{0}', space=vmem, size = 0x10000, scoped, tag = 'input window, operand 6, single buffered']
    #allocation14 [shape = 'u8[24576]{0}', space=vmem, size = 0x6000, scoped, tag = 'input window, operand 7, single buffered']
    #allocation15 [shape = 's32[1]{0}', space=sflag, size = 0x4, scoped, tag = 'scoped memory for tpu_custom_call.1']
    #allocation16 [shape = 'u8[8192]{0}', space=vmem, size = 0x2000, scoped, tag = 'output window, operand 0, single buffered']
    %13 = vsyncpa [#allocation3], 0
    %14 = vsyncpa [#allocation6], 0
    %15 = vsyncpa [#allocation9], 0
    %16 = vsyncpa [#allocation12], 0
    %17 = vsyncpa [#allocation15], 0
    %18 = vsyncpa [#allocation4], 0
    // Predicated region
    $region2: #{tpu_custom_call.1} parent=1 // pred_check
      _
    $region3: #{tpu_custom_call.1} parent=1 // pred_check_branch
      %20 = sbr.rel (0) target = $region5
    $region4: #{tpu_custom_call.1} parent=1 // pred_region
      %s22 = ssub.s32 256, 256
      %23 = vsyncadd [#allocation3], %s22
      %s24 = sshll.u32 [#allocation2], 4
      %s25 = int_to_ptr.vmem [resolvable:$true] %s24
      %30 = dma.hbm_to_vmem [thread:$0]  %s0, 256, %s25, [#allocation3], 128, 128, 8
    $region5: #{tpu_custom_call.1} parent=1 // pred_fallthru
      _
    // Predicated region
    $region6: #{tpu_custom_call.1} parent=1 // pred_check
      _
    $region7: #{tpu_custom_call.1} parent=1 // pred_check_branch
      %32 = sbr.rel (0) target = $region9
    $region8: #{tpu_custom_call.1} parent=1 // pred_region
      %s34 = ssub.s32 3072, 3072
      %35 = vsyncadd [#allocation6], %s34
      %s36 = sshll.u32 [#allocation5], 4
      %s37 = int_to_ptr.vmem [resolvable:$true] %s36
      %42 = dma.hbm_to_vmem [thread:$0]  %s1, 3072, %s37, [#allocation6], 192, 192, 12
    $region9: #{tpu_custom_call.1} parent=1 // pred_fallthru
      _
    // Predicated region
    $region10: #{tpu_custom_call.1} parent=1 // pred_check
      _
    $region11: #{tpu_custom_call.1} parent=1 // pred_check_branch
      %44 = sbr.rel (0) target = $region13
    $region12: #{tpu_custom_call.1} parent=1 // pred_region
      %s46 = ssub.s32 1024, 1024
      %47 = vsyncadd [#allocation6], %s46
      %s48 = sshll.u32 [#allocation7], 4
      %s49 = int_to_ptr.vmem [resolvable:$true] %s48
      %54 = dma.hbm_to_vmem [thread:$0]  %s2, 1024, %s49, [#allocation6], 64, 64, 4
    $region13: #{tpu_custom_call.1} parent=1 // pred_fallthru
      _
    // Predicated region
    $region14: #{tpu_custom_call.1} parent=1 // pred_check
      _
    $region15: #{tpu_custom_call.1} parent=1 // pred_check_branch
      %56 = sbr.rel (0) target = $region17
    $region16: #{tpu_custom_call.1} parent=1 // pred_region
      %s58 = ssub.s32 2048, 2048
      %59 = vsyncadd [#allocation9], %s58
      %s60 = sshll.u32 [#allocation8], 4
      %s61 = int_to_ptr.vmem [resolvable:$true] %s60
      %66 = dma.hbm_to_vmem [thread:$0]  %s3, 2048, %s61, [#allocation9], 128, 128, 8
    $region17: #{tpu_custom_call.1} parent=1 // pred_fallthru
      _
    // Predicated region
    $region18: #{tpu_custom_call.1} parent=1 // pred_check
      _
    $region19: #{tpu_custom_call.1} parent=1 // pred_check_branch
      %68 = sbr.rel (0) target = $region21
    $region20: #{tpu_custom_call.1} parent=1 // pred_region
      %s70 = ssub.s32 2048, 2048
      %71 = vsyncadd [#allocation9], %s70
      %s72 = sshll.u32 [#allocation10], 4
      %s73 = int_to_ptr.vmem [resolvable:$true] %s72
      %78 = dma.hbm_to_vmem [thread:$0]  %s4, 2048, %s73, [#allocation9], 64, 64, 4
    $region21: #{tpu_custom_call.1} parent=1 // pred_fallthru
      _
    // Predicated region
    $region22: #{tpu_custom_call.1} parent=1 // pred_check
      _
    $region23: #{tpu_custom_call.1} parent=1 // pred_check_branch
      %80 = sbr.rel (0) target = $region25
    $region24: #{tpu_custom_call.1} parent=1 // pred_region
      %s82 = ssub.s32 2048, 2048
      %83 = vsyncadd [#allocation12], %s82
      %s84 = sshll.u32 [#allocation11], 4
      %s85 = int_to_ptr.vmem [resolvable:$true] %s84
      %90 = dma.hbm_to_vmem [thread:$0]  %s5, 2048, %s85, [#allocation12], 128, 128, 8
    $region25: #{tpu_custom_call.1} parent=1 // pred_fallthru
      _
    // Predicated region
    $region26: #{tpu_custom_call.1} parent=1 // pred_check
      _
    $region27: #{tpu_custom_call.1} parent=1 // pred_check_branch
      %92 = sbr.rel (0) target = $region29
    $region28: #{tpu_custom_call.1} parent=1 // pred_region
      %s94 = ssub.s32 2048, 2048
      %95 = vsyncadd [#allocation12], %s94
      %s96 = sshll.u32 [#allocation13], 4
      %s97 = int_to_ptr.vmem [resolvable:$true] %s96
      %102 = dma.hbm_to_vmem [thread:$0]  %s6, 2048, %s97, [#allocation12], 64, 64, 4
    $region29: #{tpu_custom_call.1} parent=1 // pred_fallthru
      _
    // Predicated region
    $region30: #{tpu_custom_call.1} parent=1 // pred_check
      _
    $region31: #{tpu_custom_call.1} parent=1 // pred_check_branch
      %104 = sbr.rel (0) target = $region33
    $region32: #{tpu_custom_call.1} parent=1 // pred_region
      %s106 = ssub.s32 768, 768
      %107 = vsyncadd [#allocation15], %s106
      %s108 = sshll.u32 [#allocation14], 4
      %s109 = int_to_ptr.vmem [resolvable:$true] %s108
      %114 = dma.hbm_to_vmem [thread:$0]  %s7, 768, %s109, [#allocation15], 384, 384, 24
    $region33: #{tpu_custom_call.1} parent=1 // pred_fallthru
      _
    // Predicated region
    $region34: #{tpu_custom_call.1} parent=1 // pred_check
      _
    $region35: #{tpu_custom_call.1} parent=1 // pred_check_branch
      %116 = sbr.rel (0) target = $region37
    $region36: #{tpu_custom_call.1} parent=1 // pred_region
      %117 = dma.done [#allocation3], 256
    $region37: #{tpu_custom_call.1} parent=1 // pred_fallthru
      _
    // Predicated region
    $region38: #{tpu_custom_call.1} parent=1 // pred_check
      _
    $region39: #{tpu_custom_call.1} parent=1 // pred_check_branch
      %119 = sbr.rel (0) target = $region41
    $region40: #{tpu_custom_call.1} parent=1 // pred_region
      %120 = dma.done [#allocation6], 3072
    $region41: #{tpu_custom_call.1} parent=1 // pred_fallthru
      _
    // Predicated region
    $region42: #{tpu_custom_call.1} parent=1 // pred_check
      _
    $region43: #{tpu_custom_call.1} parent=1 // pred_check_branch
      %122 = sbr.rel (0) target = $region45
    $region44: #{tpu_custom_call.1} parent=1 // pred_region
      %123 = dma.done [#allocation6], 1024
    $region45: #{tpu_custom_call.1} parent=1 // pred_fallthru
      _
    // Predicated region
    $region46: #{tpu_custom_call.1} parent=1 // pred_check
      _
    $region47: #{tpu_custom_call.1} parent=1 // pred_check_branch
      %125 = sbr.rel (0) target = $region49
    $region48: #{tpu_custom_call.1} parent=1 // pred_region
      %126 = dma.done [#allocation9], 2048
    $region49: #{tpu_custom_call.1} parent=1 // pred_fallthru
      _
    // Predicated region
    $region50: #{tpu_custom_call.1} parent=1 // pred_check
      _
    $region51: #{tpu_custom_call.1} parent=1 // pred_check_branch
      %128 = sbr.rel (0) target = $region53
    $region52: #{tpu_custom_call.1} parent=1 // pred_region
      %129 = dma.done [#allocation9], 2048
    $region53: #{tpu_custom_call.1} parent=1 // pred_fallthru
      _
    // Predicated region
    $region54: #{tpu_custom_call.1} parent=1 // pred_check
      _
    $region55: #{tpu_custom_call.1} parent=1 // pred_check_branch
      %131 = sbr.rel (0) target = $region57
    $region56: #{tpu_custom_call.1} parent=1 // pred_region
      %132 = dma.done [#allocation12], 2048
    $region57: #{tpu_custom_call.1} parent=1 // pred_fallthru
      _
    // Predicated region
    $region58: #{tpu_custom_call.1} parent=1 // pred_check
      _
    $region59: #{tpu_custom_call.1} parent=1 // pred_check_branch
      %134 = sbr.rel (0) target = $region61
    $region60: #{tpu_custom_call.1} parent=1 // pred_region
      %135 = dma.done [#allocation12], 2048
    $region61: #{tpu_custom_call.1} parent=1 // pred_fallthru
      _
    // Predicated region
    $region62: #{tpu_custom_call.1} parent=1 // pred_check
      _
    $region63: #{tpu_custom_call.1} parent=1 // pred_check_branch
      %137 = sbr.rel (0) target = $region65
    $region64: #{tpu_custom_call.1} parent=1 // pred_region
      %138 = dma.done [#allocation15], 768
    $region65: #{tpu_custom_call.1} parent=1 // pred_fallthru
      _
    %v140 = vld [vmem:[#allocation2] sm:$0xff]
    %v141 = vld [vmem:[#allocation2 + $0x8] sm:$0xff]
    %v142 = vpack.c.bf16 %v141, %v140
    %v143 = vld [vmem:[#allocation14] sm:$0xff]
    %v144 = vld [vmem:[#allocation14 + $0x8] sm:$0xff]
    %v145 = vld [vmem:[#allocation14 + $0x10] sm:$0xff]
    %v146 = vld [vmem:[#allocation14 + $0x18] sm:$0xff]
    %v147 = vld [vmem:[#allocation5] sm:$0xff]
    %v148 = vld [vmem:[#allocation5 + $0x8] sm:$0xf]
    %v149 = vld [vmem:[#allocation5 + $0xc] sm:$0xff]
    %v150 = vld [vmem:[#allocation5 + $0x14] sm:$0xf]
    %v151 = vld [vmem:[#allocation5 + $0x18] sm:$0xff]
    %v152 = vld [vmem:[#allocation5 + $0x20] sm:$0xf]
    %v153 = vld [vmem:[#allocation5 + $0x24] sm:$0xff]
    %v154 = vld [vmem:[#allocation5 + $0x2c] sm:$0xf]
    %v155 = vld [vmem:[#allocation5 + $0x30] sm:$0xff]
    %v156 = vld [vmem:[#allocation5 + $0x38] sm:$0xf]
    %v157 = vld [vmem:[#allocation5 + $0x3c] sm:$0xff]
    %v158 = vld [vmem:[#allocation5 + $0x44] sm:$0xf]
    %v159 = vld [vmem:[#allocation5 + $0x48] sm:$0xff]
    %v160 = vld [vmem:[#allocation5 + $0x50] sm:$0xf]
    %v161 = vld [vmem:[#allocation5 + $0x54] sm:$0xff]
    %v162 = vld [vmem:[#allocation5 + $0x5c] sm:$0xf]
    %v163 = vld [vmem:[#allocation5 + $0x60] sm:$0xff]
    %v164 = vld [vmem:[#allocation5 + $0x68] sm:$0xf]
    %v165 = vld [vmem:[#allocation5 + $0x6c] sm:$0xff]
    %v166 = vld [vmem:[#allocation5 + $0x74] sm:$0xf]
    %v167 = vld [vmem:[#allocation5 + $0x78] sm:$0xff]
    %v168 = vld [vmem:[#allocation5 + $0x80] sm:$0xf]
    %v169 = vld [vmem:[#allocation5 + $0x84] sm:$0xff]
    %v170 = vld [vmem:[#allocation5 + $0x8c] sm:$0xf]
    %v171 = vld [vmem:[#allocation5 + $0x90] sm:$0xff]
    %v172 = vld [vmem:[#allocation5 + $0x98] sm:$0xf]
    %v173 = vld [vmem:[#allocation5 + $0x9c] sm:$0xff]
    %v174 = vld [vmem:[#allocation5 + $0xa4] sm:$0xf]
    %v175 = vld [vmem:[#allocation5 + $0xa8] sm:$0xff]
    %v176 = vld [vmem:[#allocation5 + $0xb0] sm:$0xf]
    %v177 = vld [vmem:[#allocation5 + $0xb4] sm:$0xff]
    %v178 = vld [vmem:[#allocation5 + $0xbc] sm:$0xf]
    %v179 = vlaneseq
    %v180 = vshrl.u32 %v179, 7
    %v181 = vsub.s32 0, %v180
    %v182 = vrot.slane %v143, %v181
    %v183 = vlaneseq
    %v184 = vshrl.u32 %v183, 7
    %v185 = vsub.s32 0, %v184
    %v186 = vrot.slane %v144, %v185
    %v187 = vlaneseq
    %v188 = vshrl.u32 %v187, 7
    %v189 = vsub.s32 0, %v188
    %v190 = vrot.slane %v145, %v189
    %v223 = vunpack.c.l.b16 %v147
    %v224 = vunpack.c.h.b16 %v147
    %v225 = vunpack.c.l.b16 %v148
    %v226 = vunpack.c.l.b16 %v149
    %v227 = vunpack.c.h.b16 %v149
    %v228 = vunpack.c.l.b16 %v150
    %v229 = vunpack.c.l.b16 %v151
    %v230 = vunpack.c.h.b16 %v151
    %v231 = vunpack.c.l.b16 %v152
    %v232 = vunpack.c.l.b16 %v153
    %v233 = vunpack.c.h.b16 %v153
    %v234 = vunpack.c.l.b16 %v154
    %v235 = vunpack.c.l.b16 %v155
    %v236 = vunpack.c.h.b16 %v155
    %v237 = vunpack.c.l.b16 %v156
    %v238 = vunpack.c.l.b16 %v157
    %v239 = vunpack.c.h.b16 %v157
    %v240 = vunpack.c.l.b16 %v158
    %v241 = vunpack.c.l.b16 %v159
    %v242 = vunpack.c.h.b16 %v159
    %v243 = vunpack.c.l.b16 %v160
    %v244 = vunpack.c.l.b16 %v161
    %v245 = vunpack.c.h.b16 %v161
    %v246 = vunpack.c.l.b16 %v162
    %v247 = vunpack.c.l.b16 %v163
    %v248 = vunpack.c.h.b16 %v163
    %v249 = vunpack.c.l.b16 %v164
    %v250 = vunpack.c.l.b16 %v165
    %v251 = vunpack.c.h.b16 %v165
    %v252 = vunpack.c.l.b16 %v166
    %v253 = vunpack.c.l.b16 %v167
    %v254 = vunpack.c.h.b16 %v167
    %v255 = vunpack.c.l.b16 %v168
    %v256 = vunpack.c.l.b16 %v169
    %v257 = vunpack.c.h.b16 %v169
    %v258 = vunpack.c.l.b16 %v170
    %v259 = vunpack.c.l.b16 %v171
    %v260 = vunpack.c.h.b16 %v171
    %v261 = vunpack.c.l.b16 %v172
    %v262 = vunpack.c.l.b16 %v173
    %v263 = vunpack.c.h.b16 %v173
    %v264 = vunpack.c.l.b16 %v174
    %v265 = vunpack.c.l.b16 %v175
    %v266 = vunpack.c.h.b16 %v175
    %v267 = vunpack.c.l.b16 %v176
    %v268 = vunpack.c.l.b16 %v177
    %v269 = vunpack.c.h.b16 %v177
    %v270 = vunpack.c.l.b16 %v178
    %v271 = vpack.c.b16 %v226, %v223
    %v272 = vpack.c.b16 %v227, %v224
    %v273 = vpack.c.b16 %v228, %v225
    %v274 = vpack.c.b16 %v232, %v229
    %v275 = vpack.c.b16 %v233, %v230
    %v276 = vpack.c.b16 %v234, %v231
    %v277 = vpack.c.b16 %v238, %v235
    %v278 = vpack.c.b16 %v239, %v236
    %v279 = vpack.c.b16 %v240, %v237
    %v280 = vpack.c.b16 %v244, %v241
    %v281 = vpack.c.b16 %v245, %v242
    %v282 = vpack.c.b16 %v246, %v243
    %v283 = vpack.c.b16 %v250, %v247
    %v284 = vpack.c.b16 %v251, %v248
    %v285 = vpack.c.b16 %v252, %v249
    %v286 = vpack.c.b16 %v256, %v253
    %v287 = vpack.c.b16 %v257, %v254
    %v288 = vpack.c.b16 %v258, %v255
    %v289 = vpack.c.b16 %v262, %v259
    %v290 = vpack.c.b16 %v263, %v260
    %v291 = vpack.c.b16 %v264, %v261
    %v292 = vpack.c.b16 %v268, %v265
    %v293 = vpack.c.b16 %v269, %v266
    %v294 = vpack.c.b16 %v270, %v267
    %319 = vmatprep.subr.bf16.mxu0 %v272
    %320 = vmatpush1.bf16.msra.mxu0 %v271
    %321 = vmatprep.subr.bf16.mxu0 %v275
    %322 = vmatpush1.bf16.msra.mxu0 %v274
    %323 = vmatprep.subr.bf16.mxu0 %v278
    %324 = vmatpush1.bf16.msra.mxu0 %v277
    %325 = vmatprep.subr.bf16.mxu0 %v281
    %326 = vmatpush1.bf16.msra.mxu0 %v280
    %327 = vmatprep.subr.bf16.mxu0 %v284
    %328 = vmatpush1.bf16.msra.mxu0 %v283
    %329 = vmatprep.subr.bf16.mxu0 %v287
    %330 = vmatpush1.bf16.msra.mxu0 %v286
    %331 = vmatprep.subr.bf16.mxu0 %v290
    %332 = vmatpush1.bf16.msra.mxu0 %v289
    %333 = vmatprep.subr.bf16.mxu0 %v293
    %334 = vmatpush1.bf16.msra.mxu0 %v292
    %335 = vmatprep.subr.bf16.mxu0 0
    %336 = vmatpush1.bf16.msra.mxu0 0
    %337 = vmatprep.subr.bf16.mxu0 0
    %338 = vmatpush1.bf16.msra.mxu0 0
    %339 = vmatprep.subr.bf16.mxu0 0
    %340 = vmatpush1.bf16.msra.mxu0 0
    %341 = vmatprep.subr.bf16.mxu0 0
    %342 = vmatpush1.bf16.msra.mxu0 0
    %343 = vmatprep.subr.bf16.mxu0 0
    %344 = vmatpush1.bf16.msra.mxu0 0
    %345 = vmatprep.subr.bf16.mxu0 0
    %346 = vmatpush1.bf16.msra.mxu0 0
    %347 = vmatprep.subr.bf16.mxu0 0
    %348 = vmatpush1.bf16.msra.mxu0 0
    %349 = vmatprep.subr.bf16.mxu0 0
    %350 = vmatpush1.bf16.msra.mxu0 0
    %351 = vmatprep.mubr.bf16.mxu0 0
    %352 = vmatmul.mubr.bf16.gmra.mrb[0].mxu0 %v142
    %v353 = vpop.f32.mrb[0].mxu0
    %v354 = vadd.f32 %v182, %v353
    %v355 = vpop.f32.mrb[0].mxu0
    %v356 = vadd.f32 %v186, %v355
    %v357 = vpop.f32.mrb[0].mxu0
    %v358 = vadd.f32 %v182, %v357
    %v359 = vpop.f32.mrb[0].mxu0
    %v360 = vadd.f32 %v186, %v359
    %361 = vdwg.mxu0
    %362 = vmatprep.subr.bf16.mxu0 0
    %363 = vmatpush1.bf16.msra.mxu0 %v273
    %364 = vmatprep.subr.bf16.mxu0 0
    %365 = vmatpush1.bf16.msra.mxu0 %v276
    %366 = vmatprep.subr.bf16.mxu0 0
    %367 = vmatpush1.bf16.msra.mxu0 %v279
    %368 = vmatprep.subr.bf16.mxu0 0
    %369 = vmatpush1.bf16.msra.mxu0 %v282
    %370 = vmatprep.subr.bf16.mxu0 0
    %371 = vmatpush1.bf16.msra.mxu0 %v285
    %372 = vmatprep.subr.bf16.mxu0 0
    %373 = vmatpush1.bf16.msra.mxu0 %v288
    %374 = vmatprep.subr.bf16.mxu0 0
    %375 = vmatpush1.bf16.msra.mxu0 %v291
    %376 = vmatprep.subr.bf16.mxu0 0
    %377 = vmatpush1.bf16.msra.mxu0 %v294
    %378 = vmatprep.subr.bf16.mxu0 0
    %379 = vmatpush1.bf16.msra.mxu0 0
    %380 = vmatprep.subr.bf16.mxu0 0
    %381 = vmatpush1.bf16.msra.mxu0 0
    %382 = vmatprep.subr.bf16.mxu0 0
    %383 = vmatpush1.bf16.msra.mxu0 0
    %384 = vmatprep.subr.bf16.mxu0 0
    %385 = vmatpush1.bf16.msra.mxu0 0
    %386 = vmatprep.subr.bf16.mxu0 0
    %387 = vmatpush1.bf16.msra.mxu0 0
    %388 = vmatprep.subr.bf16.mxu0 0
    %389 = vmatpush1.bf16.msra.mxu0 0
    %390 = vmatprep.subr.bf16.mxu0 0
    %391 = vmatpush1.bf16.msra.mxu0 0
    %392 = vmatprep.subr.bf16.mxu0 0
    %393 = vmatpush1.bf16.msra.mxu0 0
    %394 = vmatprep.mubr.bf16.mxu0 0
    %395 = vmatmul.mubr.bf16.gmra.mrb[0].mxu0 %v142
    %v396 = vpop.f32.mrb[0].mxu0
    %v397 = vadd.f32 %v190, %v396
    %v398 = vpop.f32.mrb[0].mxu0
    %v399 = vpop.f32.mrb[0].mxu0
    %v400 = vadd.f32 %v190, %v399
    %v401 = vpop.f32.mrb[0].mxu0
    %402 = vdwg.mxu0
    %405 = vrot.lane.b32.xlu0 %v354, 112
    %v406 = vpop.permute.xlu0 %405
    %407 = vrot.lane.b32.xlu0 %v358, 112
    %v408 = vpop.permute.xlu0 %407
    %411 = vrot.lane.b32.xlu0 %v354, 96
    %v412 = vpop.permute.xlu0 %411
    %413 = vrot.lane.b32.xlu0 %v358, 96
    %v414 = vpop.permute.xlu0 %413
    %417 = vrot.lane.b32.xlu0 %v354, 80
    %v418 = vpop.permute.xlu0 %417
    %419 = vrot.lane.b32.xlu0 %v358, 80
    %v420 = vpop.permute.xlu0 %419
    %423 = vrot.lane.b32.xlu0 %v354, 64
    %v424 = vpop.permute.xlu0 %423
    %425 = vrot.lane.b32.xlu0 %v358, 64
    %v426 = vpop.permute.xlu0 %425
    %429 = vrot.lane.b32.xlu0 %v354, 48
    %v430 = vpop.permute.xlu0 %429
    %431 = vrot.lane.b32.xlu0 %v358, 48
    %v432 = vpop.permute.xlu0 %431
    %435 = vrot.lane.b32.xlu0 %v354, 32
    %v436 = vpop.permute.xlu0 %435
    %437 = vrot.lane.b32.xlu0 %v358, 32
    %v438 = vpop.permute.xlu0 %437
    %441 = vrot.lane.b32.xlu0 %v354, 16
    %v442 = vpop.permute.xlu0 %441
    %443 = vrot.lane.b32.xlu0 %v358, 16
    %v444 = vpop.permute.xlu0 %443
    %v447 = vpack.c.bf16 %v358, %v354
    %v448 = vpack.c.bf16 %v408, %v406
    %v449 = vpack.c.bf16 %v414, %v412
    %v450 = vpack.c.bf16 %v420, %v418
    %v451 = vpack.c.bf16 %v426, %v424
    %v452 = vpack.c.bf16 %v432, %v430
    %v453 = vpack.c.bf16 %v438, %v436
    %v454 = vpack.c.bf16 %v444, %v442
    %457 = vrot.lane.b32.xlu0 %v356, 112
    %v458 = vpop.permute.xlu0 %457
    %459 = vrot.lane.b32.xlu0 %v360, 112
    %v460 = vpop.permute.xlu0 %459
    %463 = vrot.lane.b32.xlu0 %v356, 96
    %v464 = vpop.permute.xlu0 %463
    %465 = vrot.lane.b32.xlu0 %v360, 96
    %v466 = vpop.permute.xlu0 %465
    %469 = vrot.lane.b32.xlu0 %v356, 80
    %v470 = vpop.permute.xlu0 %469
    %471 = vrot.lane.b32.xlu0 %v360, 80
    %v472 = vpop.permute.xlu0 %471
    %475 = vrot.lane.b32.xlu0 %v356, 64
    %v476 = vpop.permute.xlu0 %475
    %477 = vrot.lane.b32.xlu0 %v360, 64
    %v478 = vpop.permute.xlu0 %477
    %481 = vrot.lane.b32.xlu0 %v356, 48
    %v482 = vpop.permute.xlu0 %481
    %483 = vrot.lane.b32.xlu0 %v360, 48
    %v484 = vpop.permute.xlu0 %483
    %487 = vrot.lane.b32.xlu0 %v356, 32
    %v488 = vpop.permute.xlu0 %487
    %489 = vrot.lane.b32.xlu0 %v360, 32
    %v490 = vpop.permute.xlu0 %489
    %493 = vrot.lane.b32.xlu0 %v356, 16
    %v494 = vpop.permute.xlu0 %493
    %495 = vrot.lane.b32.xlu0 %v360, 16
    %v496 = vpop.permute.xlu0 %495
    %v499 = vpack.c.bf16 %v360, %v356
    %v500 = vpack.c.bf16 %v460, %v458
    %v501 = vpack.c.bf16 %v466, %v464
    %v502 = vpack.c.bf16 %v472, %v470
    %v503 = vpack.c.bf16 %v478, %v476
    %v504 = vpack.c.bf16 %v484, %v482
    %v505 = vpack.c.bf16 %v490, %v488
    %v506 = vpack.c.bf16 %v496, %v494
    %509 = vrot.lane.b32.xlu0 %v397, 112
    %v510 = vpop.permute.xlu0 %509
    %511 = vrot.lane.b32.xlu0 %v400, 112
    %v512 = vpop.permute.xlu0 %511
    %515 = vrot.lane.b32.xlu0 %v397, 96
    %v516 = vpop.permute.xlu0 %515
    %517 = vrot.lane.b32.xlu0 %v400, 96
    %v518 = vpop.permute.xlu0 %517
    %521 = vrot.lane.b32.xlu0 %v397, 80
    %v522 = vpop.permute.xlu0 %521
    %523 = vrot.lane.b32.xlu0 %v400, 80
    %v524 = vpop.permute.xlu0 %523
    %527 = vrot.lane.b32.xlu0 %v397, 64
    %v528 = vpop.permute.xlu0 %527
    %529 = vrot.lane.b32.xlu0 %v400, 64
    %v530 = vpop.permute.xlu0 %529
    %533 = vrot.lane.b32.xlu0 %v397, 48
    %v534 = vpop.permute.xlu0 %533
    %535 = vrot.lane.b32.xlu0 %v400, 48
    %v536 = vpop.permute.xlu0 %535
    %539 = vrot.lane.b32.xlu0 %v397, 32
    %v540 = vpop.permute.xlu0 %539
    %541 = vrot.lane.b32.xlu0 %v400, 32
    %v542 = vpop.permute.xlu0 %541
    %545 = vrot.lane.b32.xlu0 %v397, 16
    %v546 = vpop.permute.xlu0 %545
    %547 = vrot.lane.b32.xlu0 %v400, 16
    %v548 = vpop.permute.xlu0 %547
    %v551 = vpack.c.bf16 %v400, %v397
    %v552 = vpack.c.bf16 %v512, %v510
    %v553 = vpack.c.bf16 %v518, %v516
    %v554 = vpack.c.bf16 %v524, %v522
    %v555 = vpack.c.bf16 %v530, %v528
    %v556 = vpack.c.bf16 %v536, %v534
    %v557 = vpack.c.bf16 %v542, %v540
    %v558 = vpack.c.bf16 %v548, %v546
    %v559 = vlaneseq
    %v560 = vshrl.u32 %v559, 7
    %v561 = vadd.s32 %v560, 8
    %v562 = vlaneseq
    %v563 = vand.u32 %v562, 127
    %vm564 = vcmp.lt.s32.totalorder %v560, 0
    %v565 = vsub.s32 0, %v560
    %v566 = vsel %vm564, %v565, %v560
    %v567 = vshrl.u32 %v566, 1
    %v568 = vand.u32 %v566, 1
    %v569 = vsub.s32 0, %v568
    %v570 = vsel %vm564, %v569, %v568
    %vm571 = vcmp.lt.s32.totalorder %v561, 0
    %v572 = vsub.s32 0, %v561
    %v573 = vsel %vm571, %v572, %v561
    %v574 = vshrl.u32 %v573, 1
    %v575 = vand.u32 %v573, 1
    %v576 = vsub.s32 0, %v575
    %v577 = vsel %vm571, %v576, %v575
    %vm578 = vcmp.ne.s32.totalorder %v570, 0
    %vm579 = vcmp.ne.s32.totalorder %v577, 0
    %vm580 = vcmp.lt.s32.totalorder %v570, 0
    %vm581 = vcmp.lt.s32.totalorder %v577, 0
    %vm582 = vmand %vm580, %vm578
    %vm583 = vmand %vm581, %vm579
    %v584 = vadd.s32 %v570, 2
    %v585 = vadd.s32 %v577, 2
    %v586 = vsel %vm582, %v584, %v570
    %v587 = vsel %vm583, %v585, %v577
    %vm588 = vcmp.lt.s32.totalorder %v563, 0
    %v589 = vsub.s32 0, %v563
    %v590 = vsel %vm588, %v589, %v563
    %v591 = vshrl.u32 %v590, 1
    %v592 = vand.u32 %v590, 1
    %v593 = vsub.s32 0, %v592
    %v594 = vsel %vm588, %v593, %v592
    %vm595 = vcmp.ne.s32.totalorder %v594, 0
    %vm596 = vcmp.lt.s32.totalorder %v594, 0
    %vm597 = vmand %vm596, %vm595
    %v598 = vadd.s32 %v594, 2
    %v599 = vsel %vm597, %v598, %v594
    %vm600 = vcmp.eq.s32.totalorder %v586, %v599
    %vm601 = vcmp.eq.s32.totalorder %v587, %v599
    %v602 = vsel %vm600, 0.0, -1e+30
    %v603 = vsel %vm601, 0.0, -1e+30
    %vm604 = vcmask 130048
    %v606 = vsel %vm604, %v447, 0
    %v609 = vsel %vm604, %v499, 0
    %611 = vmatprep.subr.bf16.mxu0 0
    %612 = vmatpush1.bf16.xpose.msra.mxu0 %v609
    %613 = vmatprep.subr.bf16.mxu0 0
    %614 = vmatpush1.bf16.xpose.msra.mxu0 0
    %615 = vmatprep.subr.bf16.mxu0 0
    %616 = vmatpush1.bf16.xpose.msra.mxu0 0
    %617 = vmatprep.subr.bf16.mxu0 0
    %618 = vmatpush1.bf16.xpose.msra.mxu0 0
    %619 = vmatprep.subr.bf16.mxu0 0
    %620 = vmatpush1.bf16.xpose.msra.mxu0 0
    %621 = vmatprep.subr.bf16.mxu0 0
    %622 = vmatpush1.bf16.xpose.msra.mxu0 0
    %623 = vmatprep.subr.bf16.mxu0 0
    %624 = vmatpush1.bf16.xpose.msra.mxu0 0
    %625 = vmatprep.subr.bf16.mxu0 0
    %626 = vmatpush1.bf16.xpose.msra.mxu0 0
    %627 = vmatprep.subr.bf16.mxu0 0
    %628 = vmatpush1.bf16.xpose.msra.mxu0 0
    %629 = vmatprep.subr.bf16.mxu0 0
    %630 = vmatpush1.bf16.xpose.msra.mxu0 0
    %631 = vmatprep.subr.bf16.mxu0 0
    %632 = vmatpush1.bf16.xpose.msra.mxu0 0
    %633 = vmatprep.subr.bf16.mxu0 0
    %634 = vmatpush1.bf16.xpose.msra.mxu0 0
    %635 = vmatprep.subr.bf16.mxu0 0
    %636 = vmatpush1.bf16.xpose.msra.mxu0 0
    %637 = vmatprep.subr.bf16.mxu0 0
    %638 = vmatpush1.bf16.xpose.msra.mxu0 0
    %639 = vmatprep.subr.bf16.mxu0 0
    %640 = vmatpush1.bf16.xpose.msra.mxu0 0
    %641 = vmatprep.subr.bf16.mxu0 0
    %642 = vmatpush1.bf16.xpose.msra.mxu0 0
    %643 = vmatprep.mubr.bf16.mxu0 0
    %644 = vmatmul.mubr.bf16.gmra.mrb[0].mxu0 %v606
    %v645 = vpop.f32.mrb[0].mxu0
    %v646 = vadd.f32 %v602, %v645
    %v647 = vpop.f32.mrb[0].mxu0
    %v648 = vpop.f32.mrb[0].mxu0
    %v649 = vadd.f32 %v603, %v648
    %v650 = vpop.f32.mrb[0].mxu0
    %651 = vdwg.mxu0
    %v653 = vsel %vm604, %v448, 0
    %v656 = vsel %vm604, %v500, 0
    %658 = vmatprep.subr.bf16.mxu0 0
    %659 = vmatpush1.bf16.xpose.msra.mxu0 %v656
    %660 = vmatprep.subr.bf16.mxu0 0
    %661 = vmatpush1.bf16.xpose.msra.mxu0 0
    %662 = vmatprep.subr.bf16.mxu0 0
    %663 = vmatpush1.bf16.xpose.msra.mxu0 0
    %664 = vmatprep.subr.bf16.mxu0 0
    %665 = vmatpush1.bf16.xpose.msra.mxu0 0
    %666 = vmatprep.subr.bf16.mxu0 0
    %667 = vmatpush1.bf16.xpose.msra.mxu0 0
    %668 = vmatprep.subr.bf16.mxu0 0
    %669 = vmatpush1.bf16.xpose.msra.mxu0 0
    %670 = vmatprep.subr.bf16.mxu0 0
    %671 = vmatpush1.bf16.xpose.msra.mxu0 0
    %672 = vmatprep.subr.bf16.mxu0 0
    %673 = vmatpush1.bf16.xpose.msra.mxu0 0
    %674 = vmatprep.subr.bf16.mxu0 0
    %675 = vmatpush1.bf16.xpose.msra.mxu0 0
    %676 = vmatprep.subr.bf16.mxu0 0
    %677 = vmatpush1.bf16.xpose.msra.mxu0 0
    %678 = vmatprep.subr.bf16.mxu0 0
    %679 = vmatpush1.bf16.xpose.msra.mxu0 0
    %680 = vmatprep.subr.bf16.mxu0 0
    %681 = vmatpush1.bf16.xpose.msra.mxu0 0
    %682 = vmatprep.subr.bf16.mxu0 0
    %683 = vmatpush1.bf16.xpose.msra.mxu0 0
    %684 = vmatprep.subr.bf16.mxu0 0
    %685 = vmatpush1.bf16.xpose.msra.mxu0 0
    %686 = vmatprep.subr.bf16.mxu0 0
    %687 = vmatpush1.bf16.xpose.msra.mxu0 0
    %688 = vmatprep.subr.bf16.mxu0 0
    %689 = vmatpush1.bf16.xpose.msra.mxu0 0
    %690 = vmatprep.mubr.bf16.mxu0 0
    %691 = vmatmul.mubr.bf16.gmra.mrb[0].mxu0 %v653
    %v692 = vpop.f32.mrb[0].mxu0
    %v693 = vadd.f32 %v602, %v692
    %v694 = vpop.f32.mrb[0].mxu0
    %v695 = vpop.f32.mrb[0].mxu0
    %v696 = vadd.f32 %v603, %v695
    %v697 = vpop.f32.mrb[0].mxu0
    %698 = vdwg.mxu0
    %v700 = vsel %vm604, %v449, 0
    %v703 = vsel %vm604, %v501, 0
    %705 = vmatprep.subr.bf16.mxu0 0
    %706 = vmatpush1.bf16.xpose.msra.mxu0 %v703
    %707 = vmatprep.subr.bf16.mxu0 0
    %708 = vmatpush1.bf16.xpose.msra.mxu0 0
    %709 = vmatprep.subr.bf16.mxu0 0
    %710 = vmatpush1.bf16.xpose.msra.mxu0 0
    %711 = vmatprep.subr.bf16.mxu0 0
    %712 = vmatpush1.bf16.xpose.msra.mxu0 0
    %713 = vmatprep.subr.bf16.mxu0 0
    %714 = vmatpush1.bf16.xpose.msra.mxu0 0
    %715 = vmatprep.subr.bf16.mxu0 0
    %716 = vmatpush1.bf16.xpose.msra.mxu0 0
    %717 = vmatprep.subr.bf16.mxu0 0
    %718 = vmatpush1.bf16.xpose.msra.mxu0 0
    %719 = vmatprep.subr.bf16.mxu0 0
    %720 = vmatpush1.bf16.xpose.msra.mxu0 0
    %721 = vmatprep.subr.bf16.mxu0 0
    %722 = vmatpush1.bf16.xpose.msra.mxu0 0
    %723 = vmatprep.subr.bf16.mxu0 0
    %724 = vmatpush1.bf16.xpose.msra.mxu0 0
    %725 = vmatprep.subr.bf16.mxu0 0
    %726 = vmatpush1.bf16.xpose.msra.mxu0 0
    %727 = vmatprep.subr.bf16.mxu0 0
    %728 = vmatpush1.bf16.xpose.msra.mxu0 0
    %729 = vmatprep.subr.bf16.mxu0 0
    %730 = vmatpush1.bf16.xpose.msra.mxu0 0
    %731 = vmatprep.subr.bf16.mxu0 0
    %732 = vmatpush1.bf16.xpose.msra.mxu0 0
    %733 = vmatprep.subr.bf16.mxu0 0
    %734 = vmatpush1.bf16.xpose.msra.mxu0 0
    %735 = vmatprep.subr.bf16.mxu0 0
    %736 = vmatpush1.bf16.xpose.msra.mxu0 0
    %737 = vmatprep.mubr.bf16.mxu0 0
    %738 = vmatmul.mubr.bf16.gmra.mrb[0].mxu0 %v700
    %v739 = vpop.f32.mrb[0].mxu0
    %v740 = vadd.f32 %v602, %v739
    %v741 = vpop.f32.mrb[0].mxu0
    %v742 = vpop.f32.mrb[0].mxu0
    %v743 = vadd.f32 %v603, %v742
    %v744 = vpop.f32.mrb[0].mxu0
    %745 = vdwg.mxu0
    %v747 = vsel %vm604, %v450, 0
    %v750 = vsel %vm604, %v502, 0
    %752 = vmatprep.subr.bf16.mxu0 0
    %753 = vmatpush1.bf16.xpose.msra.mxu0 %v750
    %754 = vmatprep.subr.bf16.mxu0 0
    %755 = vmatpush1.bf16.xpose.msra.mxu0 0
    %756 = vmatprep.subr.bf16.mxu0 0
    %757 = vmatpush1.bf16.xpose.msra.mxu0 0
    %758 = vmatprep.subr.bf16.mxu0 0
    %759 = vmatpush1.bf16.xpose.msra.mxu0 0
    %760 = vmatprep.subr.bf16.mxu0 0
    %761 = vmatpush1.bf16.xpose.msra.mxu0 0
    %762 = vmatprep.subr.bf16.mxu0 0
    %763 = vmatpush1.bf16.xpose.msra.mxu0 0
    %764 = vmatprep.subr.bf16.mxu0 0
    %765 = vmatpush1.bf16.xpose.msra.mxu0 0
    %766 = vmatprep.subr.bf16.mxu0 0
    %767 = vmatpush1.bf16.xpose.msra.mxu0 0
    %768 = vmatprep.subr.bf16.mxu0 0
    %769 = vmatpush1.bf16.xpose.msra.mxu0 0
    %770 = vmatprep.subr.bf16.mxu0 0
    %771 = vmatpush1.bf16.xpose.msra.mxu0 0
    %772 = vmatprep.subr.bf16.mxu0 0
    %773 = vmatpush1.bf16.xpose.msra.mxu0 0
    %774 = vmatprep.subr.bf16.mxu0 0
    %775 = vmatpush1.bf16.xpose.msra.mxu0 0
    %776 = vmatprep.subr.bf16.mxu0 0
    %777 = vmatpush1.bf16.xpose.msra.mxu0 0
    %778 = vmatprep.subr.bf16.mxu0 0
    %779 = vmatpush1.bf16.xpose.msra.mxu0 0
    %780 = vmatprep.subr.bf16.mxu0 0
    %781 = vmatpush1.bf16.xpose.msra.mxu0 0
    %782 = vmatprep.subr.bf16.mxu0 0
    %783 = vmatpush1.bf16.xpose.msra.mxu0 0
    %784 = vmatprep.mubr.bf16.mxu0 0
    %785 = vmatmul.mubr.bf16.gmra.mrb[0].mxu0 %v747
    %v786 = vpop.f32.mrb[0].mxu0
    %v787 = vadd.f32 %v602, %v786
    %v788 = vpop.f32.mrb[0].mxu0
    %v789 = vpop.f32.mrb[0].mxu0
    %v790 = vadd.f32 %v603, %v789
    %v791 = vpop.f32.mrb[0].mxu0
    %792 = vdwg.mxu0
    %v794 = vsel %vm604, %v451, 0
    %v797 = vsel %vm604, %v503, 0
    %799 = vmatprep.subr.bf16.mxu0 0
    %800 = vmatpush1.bf16.xpose.msra.mxu0 %v797
    %801 = vmatprep.subr.bf16.mxu0 0
    %802 = vmatpush1.bf16.xpose.msra.mxu0 0
    %803 = vmatprep.subr.bf16.mxu0 0
    %804 = vmatpush1.bf16.xpose.msra.mxu0 0
    %805 = vmatprep.subr.bf16.mxu0 0
    %806 = vmatpush1.bf16.xpose.msra.mxu0 0
    %807 = vmatprep.subr.bf16.mxu0 0
    %808 = vmatpush1.bf16.xpose.msra.mxu0 0
    %809 = vmatprep.subr.bf16.mxu0 0
    %810 = vmatpush1.bf16.xpose.msra.mxu0 0
    %811 = vmatprep.subr.bf16.mxu0 0
    %812 = vmatpush1.bf16.xpose.msra.mxu0 0
    %813 = vmatprep.subr.bf16.mxu0 0
    %814 = vmatpush1.bf16.xpose.msra.mxu0 0
    %815 = vmatprep.subr.bf16.mxu0 0
    %816 = vmatpush1.bf16.xpose.msra.mxu0 0
    %817 = vmatprep.subr.bf16.mxu0 0
    %818 = vmatpush1.bf16.xpose.msra.mxu0 0
    %819 = vmatprep.subr.bf16.mxu0 0
    %820 = vmatpush1.bf16.xpose.msra.mxu0 0
    %821 = vmatprep.subr.bf16.mxu0 0
    %822 = vmatpush1.bf16.xpose.msra.mxu0 0
    %823 = vmatprep.subr.bf16.mxu0 0
    %824 = vmatpush1.bf16.xpose.msra.mxu0 0
    %825 = vmatprep.subr.bf16.mxu0 0
    %826 = vmatpush1.bf16.xpose.msra.mxu0 0
    %827 = vmatprep.subr.bf16.mxu0 0
    %828 = vmatpush1.bf16.xpose.msra.mxu0 0
    %829 = vmatprep.subr.bf16.mxu0 0
    %830 = vmatpush1.bf16.xpose.msra.mxu0 0
    %831 = vmatprep.mubr.bf16.mxu0 0
    %832 = vmatmul.mubr.bf16.gmra.mrb[0].mxu0 %v794
    %v833 = vpop.f32.mrb[0].mxu0
    %v834 = vadd.f32 %v602, %v833
    %v835 = vpop.f32.mrb[0].mxu0
    %v836 = vpop.f32.mrb[0].mxu0
    %v837 = vadd.f32 %v603, %v836
    %v838 = vpop.f32.mrb[0].mxu0
    %839 = vdwg.mxu0
    %v841 = vsel %vm604, %v452, 0
    %v844 = vsel %vm604, %v504, 0
    %846 = vmatprep.subr.bf16.mxu0 0
    %847 = vmatpush1.bf16.xpose.msra.mxu0 %v844
    %848 = vmatprep.subr.bf16.mxu0 0
    %849 = vmatpush1.bf16.xpose.msra.mxu0 0
    %850 = vmatprep.subr.bf16.mxu0 0
    %851 = vmatpush1.bf16.xpose.msra.mxu0 0
    %852 = vmatprep.subr.bf16.mxu0 0
    %853 = vmatpush1.bf16.xpose.msra.mxu0 0
    %854 = vmatprep.subr.bf16.mxu0 0
    %855 = vmatpush1.bf16.xpose.msra.mxu0 0
    %856 = vmatprep.subr.bf16.mxu0 0
    %857 = vmatpush1.bf16.xpose.msra.mxu0 0
    %858 = vmatprep.subr.bf16.mxu0 0
    %859 = vmatpush1.bf16.xpose.msra.mxu0 0
    %860 = vmatprep.subr.bf16.mxu0 0
    %861 = vmatpush1.bf16.xpose.msra.mxu0 0
    %862 = vmatprep.subr.bf16.mxu0 0
    %863 = vmatpush1.bf16.xpose.msra.mxu0 0
    %864 = vmatprep.subr.bf16.mxu0 0
    %865 = vmatpush1.bf16.xpose.msra.mxu0 0
    %866 = vmatprep.subr.bf16.mxu0 0
    %867 = vmatpush1.bf16.xpose.msra.mxu0 0
    %868 = vmatprep.subr.bf16.mxu0 0
    %869 = vmatpush1.bf16.xpose.msra.mxu0 0
    %870 = vmatprep.subr.bf16.mxu0 0
    %871 = vmatpush1.bf16.xpose.msra.mxu0 0
    %872 = vmatprep.subr.bf16.mxu0 0
    %873 = vmatpush1.bf16.xpose.msra.mxu0 0
    %874 = vmatprep.subr.bf16.mxu0 0
    %875 = vmatpush1.bf16.xpose.msra.mxu0 0
    %876 = vmatprep.subr.bf16.mxu0 0
    %877 = vmatpush1.bf16.xpose.msra.mxu0 0
    %878 = vmatprep.mubr.bf16.mxu0 0
    %879 = vmatmul.mubr.bf16.gmra.mrb[0].mxu0 %v841
    %v880 = vpop.f32.mrb[0].mxu0
    %v881 = vadd.f32 %v602, %v880
    %v882 = vpop.f32.mrb[0].mxu0
    %v883 = vpop.f32.mrb[0].mxu0
    %v884 = vadd.f32 %v603, %v883
    %v885 = vpop.f32.mrb[0].mxu0
    %886 = vdwg.mxu0
    %v888 = vsel %vm604, %v453, 0
    %v891 = vsel %vm604, %v505, 0
    %893 = vmatprep.subr.bf16.mxu0 0
    %894 = vmatpush1.bf16.xpose.msra.mxu0 %v891
    %895 = vmatprep.subr.bf16.mxu0 0
    %896 = vmatpush1.bf16.xpose.msra.mxu0 0
    %897 = vmatprep.subr.bf16.mxu0 0
    %898 = vmatpush1.bf16.xpose.msra.mxu0 0
    %899 = vmatprep.subr.bf16.mxu0 0
    %900 = vmatpush1.bf16.xpose.msra.mxu0 0
    %901 = vmatprep.subr.bf16.mxu0 0
    %902 = vmatpush1.bf16.xpose.msra.mxu0 0
    %903 = vmatprep.subr.bf16.mxu0 0
    %904 = vmatpush1.bf16.xpose.msra.mxu0 0
    %905 = vmatprep.subr.bf16.mxu0 0
    %906 = vmatpush1.bf16.xpose.msra.mxu0 0
    %907 = vmatprep.subr.bf16.mxu0 0
    %908 = vmatpush1.bf16.xpose.msra.mxu0 0
    %909 = vmatprep.subr.bf16.mxu0 0
    %910 = vmatpush1.bf16.xpose.msra.mxu0 0
    %911 = vmatprep.subr.bf16.mxu0 0
    %912 = vmatpush1.bf16.xpose.msra.mxu0 0
    %913 = vmatprep.subr.bf16.mxu0 0
    %914 = vmatpush1.bf16.xpose.msra.mxu0 0
    %915 = vmatprep.subr.bf16.mxu0 0
    %916 = vmatpush1.bf16.xpose.msra.mxu0 0
    %917 = vmatprep.subr.bf16.mxu0 0
    %918 = vmatpush1.bf16.xpose.msra.mxu0 0
    %919 = vmatprep.subr.bf16.mxu0 0
    %920 = vmatpush1.bf16.xpose.msra.mxu0 0
    %921 = vmatprep.subr.bf16.mxu0 0
    %922 = vmatpush1.bf16.xpose.msra.mxu0 0
    %923 = vmatprep.subr.bf16.mxu0 0
    %924 = vmatpush1.bf16.xpose.msra.mxu0 0
    %925 = vmatprep.mubr.bf16.mxu0 0
    %926 = vmatmul.mubr.bf16.gmra.mrb[0].mxu0 %v888
    %v927 = vpop.f32.mrb[0].mxu0
    %v928 = vadd.f32 %v602, %v927
    %v929 = vpop.f32.mrb[0].mxu0
    %v930 = vpop.f32.mrb[0].mxu0
    %v931 = vadd.f32 %v603, %v930
    %v932 = vpop.f32.mrb[0].mxu0
    %933 = vdwg.mxu0
    %v935 = vsel %vm604, %v454, 0
    %v938 = vsel %vm604, %v506, 0
    %940 = vmatprep.subr.bf16.mxu0 0
    %941 = vmatpush1.bf16.xpose.msra.mxu0 %v938
    %942 = vmatprep.subr.bf16.mxu0 0
    %943 = vmatpush1.bf16.xpose.msra.mxu0 0
    %944 = vmatprep.subr.bf16.mxu0 0
    %945 = vmatpush1.bf16.xpose.msra.mxu0 0
    %946 = vmatprep.subr.bf16.mxu0 0
    %947 = vmatpush1.bf16.xpose.msra.mxu0 0
    %948 = vmatprep.subr.bf16.mxu0 0
    %949 = vmatpush1.bf16.xpose.msra.mxu0 0
    %950 = vmatprep.subr.bf16.mxu0 0
    %951 = vmatpush1.bf16.xpose.msra.mxu0 0
    %952 = vmatprep.subr.bf16.mxu0 0
    %953 = vmatpush1.bf16.xpose.msra.mxu0 0
    %954 = vmatprep.subr.bf16.mxu0 0
    %955 = vmatpush1.bf16.xpose.msra.mxu0 0
    %956 = vmatprep.subr.bf16.mxu0 0
    %957 = vmatpush1.bf16.xpose.msra.mxu0 0
    %958 = vmatprep.subr.bf16.mxu0 0
    %959 = vmatpush1.bf16.xpose.msra.mxu0 0
    %960 = vmatprep.subr.bf16.mxu0 0
    %961 = vmatpush1.bf16.xpose.msra.mxu0 0
    %962 = vmatprep.subr.bf16.mxu0 0
    %963 = vmatpush1.bf16.xpose.msra.mxu0 0
    %964 = vmatprep.subr.bf16.mxu0 0
    %965 = vmatpush1.bf16.xpose.msra.mxu0 0
    %966 = vmatprep.subr.bf16.mxu0 0
    %967 = vmatpush1.bf16.xpose.msra.mxu0 0
    %968 = vmatprep.subr.bf16.mxu0 0
    %969 = vmatpush1.bf16.xpose.msra.mxu0 0
    %970 = vmatprep.subr.bf16.mxu0 0
    %971 = vmatpush1.bf16.xpose.msra.mxu0 0
    %972 = vmatprep.mubr.bf16.mxu0 0
    %973 = vmatmul.mubr.bf16.gmra.mrb[0].mxu0 %v935
    %v974 = vpop.f32.mrb[0].mxu0
    %v975 = vadd.f32 %v602, %v974
    %v976 = vpop.f32.mrb[0].mxu0
    %v977 = vpop.f32.mrb[0].mxu0
    %v978 = vadd.f32 %v603, %v977
    %v979 = vpop.f32.mrb[0].mxu0
    %980 = vdwg.mxu0
    %v981 = vsel %vm604, %v646, -inf
    %982 = vmax.xlane.f32.xlu0 %v981
    %v983 = vpop.xlane.xlu0 %982
    %v984 = vsel %vm604, %v649, -inf
    %985 = vmax.xlane.f32.xlu0 %v984
    %v986 = vpop.xlane.xlu0 %985
    %v987 = vsel %vm604, %v693, -inf
    %988 = vmax.xlane.f32.xlu0 %v987
    %v989 = vpop.xlane.xlu0 %988
    %v990 = vsel %vm604, %v696, -inf
    %991 = vmax.xlane.f32.xlu0 %v990
    %v992 = vpop.xlane.xlu0 %991
    %v993 = vsel %vm604, %v740, -inf
    %994 = vmax.xlane.f32.xlu0 %v993
    %v995 = vpop.xlane.xlu0 %994
    %v996 = vsel %vm604, %v743, -inf
    %997 = vmax.xlane.f32.xlu0 %v996
    %v998 = vpop.xlane.xlu0 %997
    %v999 = vsel %vm604, %v787, -inf
    %1000 = vmax.xlane.f32.xlu0 %v999
    %v1001 = vpop.xlane.xlu0 %1000
    %v1002 = vsel %vm604, %v790, -inf
    %1003 = vmax.xlane.f32.xlu0 %v1002
    %v1004 = vpop.xlane.xlu0 %1003
    %v1005 = vsel %vm604, %v834, -inf
    %1006 = vmax.xlane.f32.xlu0 %v1005
    %v1007 = vpop.xlane.xlu0 %1006
    %v1008 = vsel %vm604, %v837, -inf
    %1009 = vmax.xlane.f32.xlu0 %v1008
    %v1010 = vpop.xlane.xlu0 %1009
    %v1011 = vsel %vm604, %v881, -inf
    %1012 = vmax.xlane.f32.xlu0 %v1011
    %v1013 = vpop.xlane.xlu0 %1012
    %v1014 = vsel %vm604, %v884, -inf
    %1015 = vmax.xlane.f32.xlu0 %v1014
    %v1016 = vpop.xlane.xlu0 %1015
    %v1017 = vsel %vm604, %v928, -inf
    %1018 = vmax.xlane.f32.xlu0 %v1017
    %v1019 = vpop.xlane.xlu0 %1018
    %v1020 = vsel %vm604, %v931, -inf
    %1021 = vmax.xlane.f32.xlu0 %v1020
    %v1022 = vpop.xlane.xlu0 %1021
    %v1023 = vsel %vm604, %v975, -inf
    %1024 = vmax.xlane.f32.xlu0 %v1023
    %v1025 = vpop.xlane.xlu0 %1024
    %v1026 = vsel %vm604, %v978, -inf
    %1027 = vmax.xlane.f32.xlu0 %v1026
    %v1028 = vpop.xlane.xlu0 %1027
    %v1029 = vsub.f32 %v646, %v983
    %v1030 = vsub.f32 %v649, %v986
    %v1031 = vsub.f32 %v693, %v989
    %v1032 = vsub.f32 %v696, %v992
    %v1033 = vsub.f32 %v740, %v995
    %v1034 = vsub.f32 %v743, %v998
    %v1035 = vsub.f32 %v787, %v1001
    %v1036 = vsub.f32 %v790, %v1004
    %v1037 = vsub.f32 %v834, %v1007
    %v1038 = vsub.f32 %v837, %v1010
    %v1039 = vsub.f32 %v881, %v1013
    %v1040 = vsub.f32 %v884, %v1016
    %v1041 = vsub.f32 %v928, %v1019
    %v1042 = vsub.f32 %v931, %v1022
    %v1043 = vsub.f32 %v975, %v1025
    %v1044 = vsub.f32 %v978, %v1028
    %v1045 = vmul.f32 %v1029, 1.442695
    %v1046 = vpow.pop %v1045
    %v1047 = vmul.f32 %v1030, 1.442695
    %v1048 = vpow.pop %v1047
    %v1049 = vmul.f32 %v1031, 1.442695
    %v1050 = vpow.pop %v1049
    %v1051 = vmul.f32 %v1032, 1.442695
    %v1052 = vpow.pop %v1051
    %v1053 = vmul.f32 %v1033, 1.442695
    %v1054 = vpow.pop %v1053
    %v1055 = vmul.f32 %v1034, 1.442695
    %v1056 = vpow.pop %v1055
    %v1057 = vmul.f32 %v1035, 1.442695
    %v1058 = vpow.pop %v1057
    %v1059 = vmul.f32 %v1036, 1.442695
    %v1060 = vpow.pop %v1059
    %v1061 = vmul.f32 %v1037, 1.442695
    %v1062 = vpow.pop %v1061
    %v1063 = vmul.f32 %v1038, 1.442695
    %v1064 = vpow.pop %v1063
    %v1065 = vmul.f32 %v1039, 1.442695
    %v1066 = vpow.pop %v1065
    %v1067 = vmul.f32 %v1040, 1.442695
    %v1068 = vpow.pop %v1067
    %v1069 = vmul.f32 %v1041, 1.442695
    %v1070 = vpow.pop %v1069
    %v1071 = vmul.f32 %v1042, 1.442695
    %v1072 = vpow.pop %v1071
    %v1073 = vmul.f32 %v1043, 1.442695
    %v1074 = vpow.pop %v1073
    %v1075 = vmul.f32 %v1044, 1.442695
    %v1076 = vpow.pop %v1075
    %v1077 = vsel %vm604, %v1046, 0.0
    %1078 = vadd.xlane.f32.xlu0 %v1077
    %v1079 = vpop.xlane.xlu0 %1078
    %v1080 = vsel %vm604, %v1048, 0.0
    %1081 = vadd.xlane.f32.xlu0 %v1080
    %v1082 = vpop.xlane.xlu0 %1081
    %v1083 = vsel %vm604, %v1050, 0.0
    %1084 = vadd.xlane.f32.xlu0 %v1083
    %v1085 = vpop.xlane.xlu0 %1084
    %v1086 = vsel %vm604, %v1052, 0.0
    %1087 = vadd.xlane.f32.xlu0 %v1086
    %v1088 = vpop.xlane.xlu0 %1087
    %v1089 = vsel %vm604, %v1054, 0.0
    %1090 = vadd.xlane.f32.xlu0 %v1089
    %v1091 = vpop.xlane.xlu0 %1090
    %v1092 = vsel %vm604, %v1056, 0.0
    %1093 = vadd.xlane.f32.xlu0 %v1092
    %v1094 = vpop.xlane.xlu0 %1093
    %v1095 = vsel %vm604, %v1058, 0.0
    %1096 = vadd.xlane.f32.xlu0 %v1095
    %v1097 = vpop.xlane.xlu0 %1096
    %v1098 = vsel %vm604, %v1060, 0.0
    %1099 = vadd.xlane.f32.xlu0 %v1098
    %v1100 = vpop.xlane.xlu0 %1099
    %v1101 = vsel %vm604, %v1062, 0.0
    %1102 = vadd.xlane.f32.xlu0 %v1101
    %v1103 = vpop.xlane.xlu0 %1102
    %v1104 = vsel %vm604, %v1064, 0.0
    %1105 = vadd.xlane.f32.xlu0 %v1104
    %v1106 = vpop.xlane.xlu0 %1105
    %v1107 = vsel %vm604, %v1066, 0.0
    %1108 = vadd.xlane.f32.xlu0 %v1107
    %v1109 = vpop.xlane.xlu0 %1108
    %v1110 = vsel %vm604, %v1068, 0.0
    %1111 = vadd.xlane.f32.xlu0 %v1110
    %v1112 = vpop.xlane.xlu0 %1111
    %v1113 = vsel %vm604, %v1070, 0.0
    %1114 = vadd.xlane.f32.xlu0 %v1113
    %v1115 = vpop.xlane.xlu0 %1114
    %v1116 = vsel %vm604, %v1072, 0.0
    %1117 = vadd.xlane.f32.xlu0 %v1116
    %v1118 = vpop.xlane.xlu0 %1117
    %v1119 = vsel %vm604, %v1074, 0.0
    %1120 = vadd.xlane.f32.xlu0 %v1119
    %v1121 = vpop.xlane.xlu0 %1120
    %v1122 = vsel %vm604, %v1076, 0.0
    %1123 = vadd.xlane.f32.xlu0 %v1122
    %v1124 = vpop.xlane.xlu0 %1123
    %v1125 = vrcp.pop %v1079
    %v1126 = vrcp.pop %v1082
    %v1127 = vrcp.pop %v1085
    %v1128 = vrcp.pop %v1088
    %v1129 = vrcp.pop %v1091
    %v1130 = vrcp.pop %v1094
    %v1131 = vrcp.pop %v1097
    %v1132 = vrcp.pop %v1100
    %v1133 = vrcp.pop %v1103
    %v1134 = vrcp.pop %v1106
    %v1135 = vrcp.pop %v1109
    %v1136 = vrcp.pop %v1112
    %v1137 = vrcp.pop %v1115
    %v1138 = vrcp.pop %v1118
    %v1139 = vrcp.pop %v1121
    %v1140 = vrcp.pop %v1124
    %v1141 = vmul.f32 %v1046, %v1125
    %v1142 = vmul.f32 %v1048, %v1126
    %v1143 = vmul.f32 %v1050, %v1127
    %v1144 = vmul.f32 %v1052, %v1128
    %v1145 = vmul.f32 %v1054, %v1129
    %v1146 = vmul.f32 %v1056, %v1130
    %v1147 = vmul.f32 %v1058, %v1131
    %v1148 = vmul.f32 %v1060, %v1132
    %v1149 = vmul.f32 %v1062, %v1133
    %v1150 = vmul.f32 %v1064, %v1134
    %v1151 = vmul.f32 %v1066, %v1135
    %v1152 = vmul.f32 %v1068, %v1136
    %v1153 = vmul.f32 %v1070, %v1137
    %v1154 = vmul.f32 %v1072, %v1138
    %v1155 = vmul.f32 %v1074, %v1139
    %v1156 = vmul.f32 %v1076, %v1140
    %v1157 = vpack.c.bf16 %v1142, %v1141
    %v1158 = vpack.c.bf16 %v1144, %v1143
    %v1159 = vpack.c.bf16 %v1146, %v1145
    %v1160 = vpack.c.bf16 %v1148, %v1147
    %v1161 = vpack.c.bf16 %v1150, %v1149
    %v1162 = vpack.c.bf16 %v1152, %v1151
    %v1163 = vpack.c.bf16 %v1154, %v1153
    %v1164 = vpack.c.bf16 %v1156, %v1155
    %v1166 = vsel %vm604, %v1157, 0
    %1168 = vmatprep.subr.bf16.mxu0 0
    %1169 = vmatpush1.bf16.msra.mxu0 %v551
    %1170 = vmatprep.subr.bf16.mxu0 0
    %1171 = vmatpush1.bf16.msra.mxu0 0
    %1172 = vmatprep.subr.bf16.mxu0 0
    %1173 = vmatpush1.bf16.msra.mxu0 0
    %1174 = vmatprep.subr.bf16.mxu0 0
    %1175 = vmatpush1.bf16.msra.mxu0 0
    %1176 = vmatprep.subr.bf16.mxu0 0
    %1177 = vmatpush1.bf16.msra.mxu0 0
    %1178 = vmatprep.subr.bf16.mxu0 0
    %1179 = vmatpush1.bf16.msra.mxu0 0
    %1180 = vmatprep.subr.bf16.mxu0 0
    %1181 = vmatpush1.bf16.msra.mxu0 0
    %1182 = vmatprep.subr.bf16.mxu0 0
    %1183 = vmatpush1.bf16.msra.mxu0 0
    %1184 = vmatprep.subr.bf16.mxu0 0
    %1185 = vmatpush1.bf16.msra.mxu0 0
    %1186 = vmatprep.subr.bf16.mxu0 0
    %1187 = vmatpush1.bf16.msra.mxu0 0
    %1188 = vmatprep.subr.bf16.mxu0 0
    %1189 = vmatpush1.bf16.msra.mxu0 0
    %1190 = vmatprep.subr.bf16.mxu0 0
    %1191 = vmatpush1.bf16.msra.mxu0 0
    %1192 = vmatprep.subr.bf16.mxu0 0
    %1193 = vmatpush1.bf16.msra.mxu0 0
    %1194 = vmatprep.subr.bf16.mxu0 0
    %1195 = vmatpush1.bf16.msra.mxu0 0
    %1196 = vmatprep.subr.bf16.mxu0 0
    %1197 = vmatpush1.bf16.msra.mxu0 0
    %1198 = vmatprep.subr.bf16.mxu0 0
    %1199 = vmatpush1.bf16.msra.mxu0 0
    %1200 = vmatprep.mubr.bf16.mxu0 0
    %1201 = vmatmul.mubr.bf16.gmra.mrb[0].mxu0 %v1166
    %v1202 = vpop.f32.mrb[0].mxu0
    %v1203 = vadd.f32 0.0, %v1202
    %v1204 = vpop.f32.mrb[0].mxu0
    %v1205 = vpop.f32.mrb[0].mxu0
    %v1206 = vadd.f32 0.0, %v1205
    %v1207 = vpop.f32.mrb[0].mxu0
    %1208 = vdwg.mxu0
    %v1210 = vsel %vm604, %v1158, 0
    %1212 = vmatprep.subr.bf16.mxu0 0
    %1213 = vmatpush1.bf16.msra.mxu0 %v552
    %1214 = vmatprep.subr.bf16.mxu0 0
    %1215 = vmatpush1.bf16.msra.mxu0 0
    %1216 = vmatprep.subr.bf16.mxu0 0
    %1217 = vmatpush1.bf16.msra.mxu0 0
    %1218 = vmatprep.subr.bf16.mxu0 0
    %1219 = vmatpush1.bf16.msra.mxu0 0
    %1220 = vmatprep.subr.bf16.mxu0 0
    %1221 = vmatpush1.bf16.msra.mxu0 0
    %1222 = vmatprep.subr.bf16.mxu0 0
    %1223 = vmatpush1.bf16.msra.mxu0 0
    %1224 = vmatprep.subr.bf16.mxu0 0
    %1225 = vmatpush1.bf16.msra.mxu0 0
    %1226 = vmatprep.subr.bf16.mxu0 0
    %1227 = vmatpush1.bf16.msra.mxu0 0
    %1228 = vmatprep.subr.bf16.mxu0 0
    %1229 = vmatpush1.bf16.msra.mxu0 0
    %1230 = vmatprep.subr.bf16.mxu0 0
    %1231 = vmatpush1.bf16.msra.mxu0 0
    %1232 = vmatprep.subr.bf16.mxu0 0
    %1233 = vmatpush1.bf16.msra.mxu0 0
    %1234 = vmatprep.subr.bf16.mxu0 0
    %1235 = vmatpush1.bf16.msra.mxu0 0
    %1236 = vmatprep.subr.bf16.mxu0 0
    %1237 = vmatpush1.bf16.msra.mxu0 0
    %1238 = vmatprep.subr.bf16.mxu0 0
    %1239 = vmatpush1.bf16.msra.mxu0 0
    %1240 = vmatprep.subr.bf16.mxu0 0
    %1241 = vmatpush1.bf16.msra.mxu0 0
    %1242 = vmatprep.subr.bf16.mxu0 0
    %1243 = vmatpush1.bf16.msra.mxu0 0
    %1244 = vmatprep.mubr.bf16.mxu0 0
    %1245 = vmatmul.mubr.bf16.gmra.mrb[0].mxu0 %v1210
    %v1246 = vpop.f32.mrb[0].mxu0
    %v1247 = vadd.f32 0.0, %v1246
    %v1248 = vpop.f32.mrb[0].mxu0
    %v1249 = vpop.f32.mrb[0].mxu0
    %v1250 = vadd.f32 0.0, %v1249
    %v1251 = vpop.f32.mrb[0].mxu0
    %1252 = vdwg.mxu0
    %v1254 = vsel %vm604, %v1159, 0
    %1256 = vmatprep.subr.bf16.mxu0 0
    %1257 = vmatpush1.bf16.msra.mxu0 %v553
    %1258 = vmatprep.subr.bf16.mxu0 0
    %1259 = vmatpush1.bf16.msra.mxu0 0
    %1260 = vmatprep.subr.bf16.mxu0 0
    %1261 = vmatpush1.bf16.msra.mxu0 0
    %1262 = vmatprep.subr.bf16.mxu0 0
    %1263 = vmatpush1.bf16.msra.mxu0 0
    %1264 = vmatprep.subr.bf16.mxu0 0
    %1265 = vmatpush1.bf16.msra.mxu0 0
    %1266 = vmatprep.subr.bf16.mxu0 0
    %1267 = vmatpush1.bf16.msra.mxu0 0
    %1268 = vmatprep.subr.bf16.mxu0 0
    %1269 = vmatpush1.bf16.msra.mxu0 0
    %1270 = vmatprep.subr.bf16.mxu0 0
    %1271 = vmatpush1.bf16.msra.mxu0 0
    %1272 = vmatprep.subr.bf16.mxu0 0
    %1273 = vmatpush1.bf16.msra.mxu0 0
    %1274 = vmatprep.subr.bf16.mxu0 0
    %1275 = vmatpush1.bf16.msra.mxu0 0
    %1276 = vmatprep.subr.bf16.mxu0 0
    %1277 = vmatpush1.bf16.msra.mxu0 0
    %1278 = vmatprep.subr.bf16.mxu0 0
    %1279 = vmatpush1.bf16.msra.mxu0 0
    %1280 = vmatprep.subr.bf16.mxu0 0
    %1281 = vmatpush1.bf16.msra.mxu0 0
    %1282 = vmatprep.subr.bf16.mxu0 0
    %1283 = vmatpush1.bf16.msra.mxu0 0
    %1284 = vmatprep.subr.bf16.mxu0 0
    %1285 = vmatpush1.bf16.msra.mxu0 0
    %1286 = vmatprep.subr.bf16.mxu0 0
    %1287 = vmatpush1.bf16.msra.mxu0 0
    %1288 = vmatprep.mubr.bf16.mxu0 0
    %1289 = vmatmul.mubr.bf16.gmra.mrb[0].mxu0 %v1254
    %v1290 = vpop.f32.mrb[0].mxu0
    %v1291 = vadd.f32 0.0, %v1290
    %v1292 = vpop.f32.mrb[0].mxu0
    %v1293 = vpop.f32.mrb[0].mxu0
    %v1294 = vadd.f32 0.0, %v1293
    %v1295 = vpop.f32.mrb[0].mxu0
    %1296 = vdwg.mxu0
    %v1298 = vsel %vm604, %v1160, 0
    %1300 = vmatprep.subr.bf16.mxu0 0
    %1301 = vmatpush1.bf16.msra.mxu0 %v554
    %1302 = vmatprep.subr.bf16.mxu0 0
    %1303 = vmatpush1.bf16.msra.mxu0 0
    %1304 = vmatprep.subr.bf16.mxu0 0
    %1305 = vmatpush1.bf16.msra.mxu0 0
    %1306 = vmatprep.subr.bf16.mxu0 0
    %1307 = vmatpush1.bf16.msra.mxu0 0
    %1308 = vmatprep.subr.bf16.mxu0 0
    %1309 = vmatpush1.bf16.msra.mxu0 0
    %1310 = vmatprep.subr.bf16.mxu0 0
    %1311 = vmatpush1.bf16.msra.mxu0 0
    %1312 = vmatprep.subr.bf16.mxu0 0
    %1313 = vmatpush1.bf16.msra.mxu0 0
    %1314 = vmatprep.subr.bf16.mxu0 0
    %1315 = vmatpush1.bf16.msra.mxu0 0
    %1316 = vmatprep.subr.bf16.mxu0 0
    %1317 = vmatpush1.bf16.msra.mxu0 0
    %1318 = vmatprep.subr.bf16.mxu0 0
    %1319 = vmatpush1.bf16.msra.mxu0 0
    %1320 = vmatprep.subr.bf16.mxu0 0
    %1321 = vmatpush1.bf16.msra.mxu0 0
    %1322 = vmatprep.subr.bf16.mxu0 0
    %1323 = vmatpush1.bf16.msra.mxu0 0
    %1324 = vmatprep.subr.bf16.mxu0 0
    %1325 = vmatpush1.bf16.msra.mxu0 0
    %1326 = vmatprep.subr.bf16.mxu0 0
    %1327 = vmatpush1.bf16.msra.mxu0 0
    %1328 = vmatprep.subr.bf16.mxu0 0
    %1329 = vmatpush1.bf16.msra.mxu0 0
    %1330 = vmatprep.subr.bf16.mxu0 0
    %1331 = vmatpush1.bf16.msra.mxu0 0
    %1332 = vmatprep.mubr.bf16.mxu0 0
    %1333 = vmatmul.mubr.bf16.gmra.mrb[0].mxu0 %v1298
    %v1334 = vpop.f32.mrb[0].mxu0
    %v1335 = vadd.f32 0.0, %v1334
    %v1336 = vpop.f32.mrb[0].mxu0
    %v1337 = vpop.f32.mrb[0].mxu0
    %v1338 = vadd.f32 0.0, %v1337
    %v1339 = vpop.f32.mrb[0].mxu0
    %1340 = vdwg.mxu0
    %v1342 = vsel %vm604, %v1161, 0
    %1344 = vmatprep.subr.bf16.mxu0 0
    %1345 = vmatpush1.bf16.msra.mxu0 %v555
    %1346 = vmatprep.subr.bf16.mxu0 0
    %1347 = vmatpush1.bf16.msra.mxu0 0
    %1348 = vmatprep.subr.bf16.mxu0 0
    %1349 = vmatpush1.bf16.msra.mxu0 0
    %1350 = vmatprep.subr.bf16.mxu0 0
    %1351 = vmatpush1.bf16.msra.mxu0 0
    %1352 = vmatprep.subr.bf16.mxu0 0
    %1353 = vmatpush1.bf16.msra.mxu0 0
    %1354 = vmatprep.subr.bf16.mxu0 0
    %1355 = vmatpush1.bf16.msra.mxu0 0
    %1356 = vmatprep.subr.bf16.mxu0 0
    %1357 = vmatpush1.bf16.msra.mxu0 0
    %1358 = vmatprep.subr.bf16.mxu0 0
    %1359 = vmatpush1.bf16.msra.mxu0 0
    %1360 = vmatprep.subr.bf16.mxu0 0
    %1361 = vmatpush1.bf16.msra.mxu0 0
    %1362 = vmatprep.subr.bf16.mxu0 0
    %1363 = vmatpush1.bf16.msra.mxu0 0
    %1364 = vmatprep.subr.bf16.mxu0 0
    %1365 = vmatpush1.bf16.msra.mxu0 0
    %1366 = vmatprep.subr.bf16.mxu0 0
    %1367 = vmatpush1.bf16.msra.mxu0 0
    %1368 = vmatprep.subr.bf16.mxu0 0
    %1369 = vmatpush1.bf16.msra.mxu0 0
    %1370 = vmatprep.subr.bf16.mxu0 0
    %1371 = vmatpush1.bf16.msra.mxu0 0
    %1372 = vmatprep.subr.bf16.mxu0 0
    %1373 = vmatpush1.bf16.msra.mxu0 0
    %1374 = vmatprep.subr.bf16.mxu0 0
    %1375 = vmatpush1.bf16.msra.mxu0 0
    %1376 = vmatprep.mubr.bf16.mxu0 0
    %1377 = vmatmul.mubr.bf16.gmra.mrb[0].mxu0 %v1342
    %v1378 = vpop.f32.mrb[0].mxu0
    %v1379 = vadd.f32 0.0, %v1378
    %v1380 = vpop.f32.mrb[0].mxu0
    %v1381 = vpop.f32.mrb[0].mxu0
    %v1382 = vadd.f32 0.0, %v1381
    %v1383 = vpop.f32.mrb[0].mxu0
    %1384 = vdwg.mxu0
    %v1386 = vsel %vm604, %v1162, 0
    %1388 = vmatprep.subr.bf16.mxu0 0
    %1389 = vmatpush1.bf16.msra.mxu0 %v556
    %1390 = vmatprep.subr.bf16.mxu0 0
    %1391 = vmatpush1.bf16.msra.mxu0 0
    %1392 = vmatprep.subr.bf16.mxu0 0
    %1393 = vmatpush1.bf16.msra.mxu0 0
    %1394 = vmatprep.subr.bf16.mxu0 0
    %1395 = vmatpush1.bf16.msra.mxu0 0
    %1396 = vmatprep.subr.bf16.mxu0 0
    %1397 = vmatpush1.bf16.msra.mxu0 0
    %1398 = vmatprep.subr.bf16.mxu0 0
    %1399 = vmatpush1.bf16.msra.mxu0 0
    %1400 = vmatprep.subr.bf16.mxu0 0
    %1401 = vmatpush1.bf16.msra.mxu0 0
    %1402 = vmatprep.subr.bf16.mxu0 0
    %1403 = vmatpush1.bf16.msra.mxu0 0
    %1404 = vmatprep.subr.bf16.mxu0 0
    %1405 = vmatpush1.bf16.msra.mxu0 0
    %1406 = vmatprep.subr.bf16.mxu0 0
    %1407 = vmatpush1.bf16.msra.mxu0 0
    %1408 = vmatprep.subr.bf16.mxu0 0
    %1409 = vmatpush1.bf16.msra.mxu0 0
    %1410 = vmatprep.subr.bf16.mxu0 0
    %1411 = vmatpush1.bf16.msra.mxu0 0
    %1412 = vmatprep.subr.bf16.mxu0 0
    %1413 = vmatpush1.bf16.msra.mxu0 0
    %1414 = vmatprep.subr.bf16.mxu0 0
    %1415 = vmatpush1.bf16.msra.mxu0 0
    %1416 = vmatprep.subr.bf16.mxu0 0
    %1417 = vmatpush1.bf16.msra.mxu0 0
    %1418 = vmatprep.subr.bf16.mxu0 0
    %1419 = vmatpush1.bf16.msra.mxu0 0
    %1420 = vmatprep.mubr.bf16.mxu0 0
    %1421 = vmatmul.mubr.bf16.gmra.mrb[0].mxu0 %v1386
    %v1422 = vpop.f32.mrb[0].mxu0
    %v1423 = vadd.f32 0.0, %v1422
    %v1424 = vpop.f32.mrb[0].mxu0
    %v1425 = vpop.f32.mrb[0].mxu0
    %v1426 = vadd.f32 0.0, %v1425
    %v1427 = vpop.f32.mrb[0].mxu0
    %1428 = vdwg.mxu0
    %v1430 = vsel %vm604, %v1163, 0
    %1432 = vmatprep.subr.bf16.mxu0 0
    %1433 = vmatpush1.bf16.msra.mxu0 %v557
    %1434 = vmatprep.subr.bf16.mxu0 0
    %1435 = vmatpush1.bf16.msra.mxu0 0
    %1436 = vmatprep.subr.bf16.mxu0 0
    %1437 = vmatpush1.bf16.msra.mxu0 0
    %1438 = vmatprep.subr.bf16.mxu0 0
    %1439 = vmatpush1.bf16.msra.mxu0 0
    %1440 = vmatprep.subr.bf16.mxu0 0
    %1441 = vmatpush1.bf16.msra.mxu0 0
    %1442 = vmatprep.subr.bf16.mxu0 0
    %1443 = vmatpush1.bf16.msra.mxu0 0
    %1444 = vmatprep.subr.bf16.mxu0 0
    %1445 = vmatpush1.bf16.msra.mxu0 0
    %1446 = vmatprep.subr.bf16.mxu0 0
    %1447 = vmatpush1.bf16.msra.mxu0 0
    %1448 = vmatprep.subr.bf16.mxu0 0
    %1449 = vmatpush1.bf16.msra.mxu0 0
    %1450 = vmatprep.subr.bf16.mxu0 0
    %1451 = vmatpush1.bf16.msra.mxu0 0
    %1452 = vmatprep.subr.bf16.mxu0 0
    %1453 = vmatpush1.bf16.msra.mxu0 0
    %1454 = vmatprep.subr.bf16.mxu0 0
    %1455 = vmatpush1.bf16.msra.mxu0 0
    %1456 = vmatprep.subr.bf16.mxu0 0
    %1457 = vmatpush1.bf16.msra.mxu0 0
    %1458 = vmatprep.subr.bf16.mxu0 0
    %1459 = vmatpush1.bf16.msra.mxu0 0
    %1460 = vmatprep.subr.bf16.mxu0 0
    %1461 = vmatpush1.bf16.msra.mxu0 0
    %1462 = vmatprep.subr.bf16.mxu0 0
    %1463 = vmatpush1.bf16.msra.mxu0 0
    %1464 = vmatprep.mubr.bf16.mxu0 0
    %1465 = vmatmul.mubr.bf16.gmra.mrb[0].mxu0 %v1430
    %v1466 = vpop.f32.mrb[0].mxu0
    %v1467 = vadd.f32 0.0, %v1466
    %v1468 = vpop.f32.mrb[0].mxu0
    %v1469 = vpop.f32.mrb[0].mxu0
    %v1470 = vadd.f32 0.0, %v1469
    %v1471 = vpop.f32.mrb[0].mxu0
    %1472 = vdwg.mxu0
    %v1474 = vsel %vm604, %v1164, 0
    %1476 = vmatprep.subr.bf16.mxu0 0
    %1477 = vmatpush1.bf16.msra.mxu0 %v558
    %1478 = vmatprep.subr.bf16.mxu0 0
    %1479 = vmatpush1.bf16.msra.mxu0 0
    %1480 = vmatprep.subr.bf16.mxu0 0
    %1481 = vmatpush1.bf16.msra.mxu0 0
    %1482 = vmatprep.subr.bf16.mxu0 0
    %1483 = vmatpush1.bf16.msra.mxu0 0
    %1484 = vmatprep.subr.bf16.mxu0 0
    %1485 = vmatpush1.bf16.msra.mxu0 0
    %1486 = vmatprep.subr.bf16.mxu0 0
    %1487 = vmatpush1.bf16.msra.mxu0 0
    %1488 = vmatprep.subr.bf16.mxu0 0
    %1489 = vmatpush1.bf16.msra.mxu0 0
    %1490 = vmatprep.subr.bf16.mxu0 0
    %1491 = vmatpush1.bf16.msra.mxu0 0
    %1492 = vmatprep.subr.bf16.mxu0 0
    %1493 = vmatpush1.bf16.msra.mxu0 0
    %1494 = vmatprep.subr.bf16.mxu0 0
    %1495 = vmatpush1.bf16.msra.mxu0 0
    %1496 = vmatprep.subr.bf16.mxu0 0
    %1497 = vmatpush1.bf16.msra.mxu0 0
    %1498 = vmatprep.subr.bf16.mxu0 0
    %1499 = vmatpush1.bf16.msra.mxu0 0
    %1500 = vmatprep.subr.bf16.mxu0 0
    %1501 = vmatpush1.bf16.msra.mxu0 0
    %1502 = vmatprep.subr.bf16.mxu0 0
    %1503 = vmatpush1.bf16.msra.mxu0 0
    %1504 = vmatprep.subr.bf16.mxu0 0
    %1505 = vmatpush1.bf16.msra.mxu0 0
    %1506 = vmatprep.subr.bf16.mxu0 0
    %1507 = vmatpush1.bf16.msra.mxu0 0
    %1508 = vmatprep.mubr.bf16.mxu0 0
    %1509 = vmatmul.mubr.bf16.gmra.mrb[0].mxu0 %v1474
    %v1510 = vpop.f32.mrb[0].mxu0
    %v1511 = vadd.f32 0.0, %v1510
    %v1512 = vpop.f32.mrb[0].mxu0
    %v1513 = vpop.f32.mrb[0].mxu0
    %v1514 = vadd.f32 0.0, %v1513
    %v1515 = vpop.f32.mrb[0].mxu0
    %1516 = vdwg.mxu0
    %1519 = vrot.lane.b32.xlu0 %v1247, 16
    %v1520 = vpop.permute.xlu0 %1519
    %1521 = vrot.lane.b32.xlu0 %v1250, 16
    %v1522 = vpop.permute.xlu0 %1521
    %1527 = vrot.lane.b32.xlu0 %v1291, 32
    %v1528 = vpop.permute.xlu0 %1527
    %1529 = vrot.lane.b32.xlu0 %v1294, 32
    %v1530 = vpop.permute.xlu0 %1529
    %1535 = vrot.lane.b32.xlu0 %v1335, 48
    %v1536 = vpop.permute.xlu0 %1535
    %1537 = vrot.lane.b32.xlu0 %v1338, 48
    %v1538 = vpop.permute.xlu0 %1537
    %1543 = vrot.lane.b32.xlu0 %v1379, 64
    %v1544 = vpop.permute.xlu0 %1543
    %1545 = vrot.lane.b32.xlu0 %v1382, 64
    %v1546 = vpop.permute.xlu0 %1545
    %1551 = vrot.lane.b32.xlu0 %v1423, 80
    %v1552 = vpop.permute.xlu0 %1551
    %1553 = vrot.lane.b32.xlu0 %v1426, 80
    %v1554 = vpop.permute.xlu0 %1553
    %1559 = vrot.lane.b32.xlu0 %v1467, 96
    %v1560 = vpop.permute.xlu0 %1559
    %1561 = vrot.lane.b32.xlu0 %v1470, 96
    %v1562 = vpop.permute.xlu0 %1561
    %1567 = vrot.lane.b32.xlu0 %v1511, 112
    %v1568 = vpop.permute.xlu0 %1567
    %1569 = vrot.lane.b32.xlu0 %v1514, 112
    %v1570 = vpop.permute.xlu0 %1569
    %v1573 = vsel %vm604, %v1203, %v1520
    %v1574 = vsel %vm604, %v1206, %v1522
    %vm1575 = vcmask 261120
    %v1576 = vsel %vm1575, %v1573, %v1528
    %v1577 = vsel %vm1575, %v1574, %v1530
    %vm1578 = vcmask 392192
    %v1579 = vsel %vm1578, %v1576, %v1536
    %v1580 = vsel %vm1578, %v1577, %v1538
    %vm1581 = vcmask 523264
    %v1582 = vsel %vm1581, %v1579, %v1544
    %v1583 = vsel %vm1581, %v1580, %v1546
    %vm1584 = vcmask 654336
    %v1585 = vsel %vm1584, %v1582, %v1552
    %v1586 = vsel %vm1584, %v1583, %v1554
    %vm1587 = vcmask 785408
    %v1588 = vsel %vm1587, %v1585, %v1560
    %v1589 = vsel %vm1587, %v1586, %v1562
    %vm1590 = vcmask 916480
    %v1591 = vsel %vm1590, %v1588, %v1568
    %v1592 = vsel %vm1590, %v1589, %v1570
    %v1593 = vpack.c.bf16 %v1592, %v1591
    %v1594 = vld [vmem:[#allocation7] sm:$0xf]
    %v1595 = vld [vmem:[#allocation7 + $0x4] sm:$0xf]
    %v1596 = vld [vmem:[#allocation7 + $0x8] sm:$0xf]
    %v1597 = vld [vmem:[#allocation7 + $0xc] sm:$0xf]
    %v1598 = vld [vmem:[#allocation7 + $0x10] sm:$0xf]
    %v1599 = vld [vmem:[#allocation7 + $0x14] sm:$0xf]
    %v1600 = vld [vmem:[#allocation7 + $0x18] sm:$0xf]
    %v1601 = vld [vmem:[#allocation7 + $0x1c] sm:$0xf]
    %v1602 = vld [vmem:[#allocation7 + $0x20] sm:$0xf]
    %v1603 = vld [vmem:[#allocation7 + $0x24] sm:$0xf]
    %v1604 = vld [vmem:[#allocation7 + $0x28] sm:$0xf]
    %v1605 = vld [vmem:[#allocation7 + $0x2c] sm:$0xf]
    %v1606 = vld [vmem:[#allocation7 + $0x30] sm:$0xf]
    %v1607 = vld [vmem:[#allocation7 + $0x34] sm:$0xf]
    %v1608 = vld [vmem:[#allocation7 + $0x38] sm:$0xf]
    %v1609 = vld [vmem:[#allocation7 + $0x3c] sm:$0xf]
    %v1610 = vlaneseq
    %v1611 = vshrl.u32 %v1610, 7
    %v1612 = vsub.s32 3, %v1611
    %v1613 = vrot.slane %v143, %v1612
    %v1630 = vunpack.c.l.b16 %v1594
    %v1631 = vunpack.c.l.b16 %v1595
    %v1632 = vunpack.c.l.b16 %v1596
    %v1633 = vunpack.c.l.b16 %v1597
    %v1634 = vunpack.c.l.b16 %v1598
    %v1635 = vunpack.c.l.b16 %v1599
    %v1636 = vunpack.c.l.b16 %v1600
    %v1637 = vunpack.c.l.b16 %v1601
    %v1638 = vunpack.c.l.b16 %v1602
    %v1639 = vunpack.c.l.b16 %v1603
    %v1640 = vunpack.c.l.b16 %v1604
    %v1641 = vunpack.c.l.b16 %v1605
    %v1642 = vunpack.c.l.b16 %v1606
    %v1643 = vunpack.c.l.b16 %v1607
    %v1644 = vunpack.c.l.b16 %v1608
    %v1645 = vunpack.c.l.b16 %v1609
    %v1646 = vpack.c.b16 %v1631, %v1630
    %v1647 = vpack.c.b16 %v1633, %v1632
    %v1648 = vpack.c.b16 %v1635, %v1634
    %v1649 = vpack.c.b16 %v1637, %v1636
    %v1650 = vpack.c.b16 %v1639, %v1638
    %v1651 = vpack.c.b16 %v1641, %v1640
    %v1652 = vpack.c.b16 %v1643, %v1642
    %v1653 = vpack.c.b16 %v1645, %v1644
    %1662 = vmatprep.subr.bf16.mxu0 0
    %1663 = vmatpush1.bf16.msra.mxu0 %v1646
    %1664 = vmatprep.subr.bf16.mxu0 0
    %1665 = vmatpush1.bf16.msra.mxu0 %v1647
    %1666 = vmatprep.subr.bf16.mxu0 0
    %1667 = vmatpush1.bf16.msra.mxu0 %v1648
    %1668 = vmatprep.subr.bf16.mxu0 0
    %1669 = vmatpush1.bf16.msra.mxu0 %v1649
    %1670 = vmatprep.subr.bf16.mxu0 0
    %1671 = vmatpush1.bf16.msra.mxu0 %v1650
    %1672 = vmatprep.subr.bf16.mxu0 0
    %1673 = vmatpush1.bf16.msra.mxu0 %v1651
    %1674 = vmatprep.subr.bf16.mxu0 0
    %1675 = vmatpush1.bf16.msra.mxu0 %v1652
    %1676 = vmatprep.subr.bf16.mxu0 0
    %1677 = vmatpush1.bf16.msra.mxu0 %v1653
    %1678 = vmatprep.subr.bf16.mxu0 0
    %1679 = vmatpush1.bf16.msra.mxu0 0
    %1680 = vmatprep.subr.bf16.mxu0 0
    %1681 = vmatpush1.bf16.msra.mxu0 0
    %1682 = vmatprep.subr.bf16.mxu0 0
    %1683 = vmatpush1.bf16.msra.mxu0 0
    %1684 = vmatprep.subr.bf16.mxu0 0
    %1685 = vmatpush1.bf16.msra.mxu0 0
    %1686 = vmatprep.subr.bf16.mxu0 0
    %1687 = vmatpush1.bf16.msra.mxu0 0
    %1688 = vmatprep.subr.bf16.mxu0 0
    %1689 = vmatpush1.bf16.msra.mxu0 0
    %1690 = vmatprep.subr.bf16.mxu0 0
    %1691 = vmatpush1.bf16.msra.mxu0 0
    %1692 = vmatprep.subr.bf16.mxu0 0
    %1693 = vmatpush1.bf16.msra.mxu0 0
    %1694 = vmatprep.mubr.bf16.mxu0 0
    %1695 = vmatmul.mubr.bf16.gmra.mrb[0].mxu0 %v1593
    %v1696 = vpop.f32.mrb[0].mxu0
    %v1697 = vadd.f32 %v1613, %v1696
    %v1698 = vpop.f32.mrb[0].mxu0
    %v1699 = vpop.f32.mrb[0].mxu0
    %v1700 = vadd.f32 %v1613, %v1699
    %v1701 = vpop.f32.mrb[0].mxu0
    %1702 = vdwg.mxu0
    %v1703 = vadd.f32 %v140, %v1697
    %v1704 = vadd.f32 %v141, %v1700
    %1705 = vadd.xlane.f32.xlu0 %v1703
    %v1706 = vpop.xlane.xlu0 %1705
    %1707 = vadd.xlane.f32.xlu0 %v1704
    %v1708 = vpop.xlane.xlu0 %1707
    %v1709 = vrcp.pop 128.0
    %v1710 = vmul.f32 %v1706, %v1709
    %v1711 = vmul.f32 %v1708, %v1709
    %v1712 = vsub.f32 %v1703, %v1710
    %v1713 = vsub.f32 %v1704, %v1711
    %v1714 = vmul.f32 %v1712, %v1712
    %v1715 = vmul.f32 %v1713, %v1713
    %1716 = vadd.xlane.f32.xlu0 %v1714
    %v1717 = vpop.xlane.xlu0 %1716
    %1718 = vadd.xlane.f32.xlu0 %v1715
    %v1719 = vpop.xlane.xlu0 %1718
    %v1720 = vmul.f32 %v1717, %v1709
    %v1721 = vmul.f32 %v1719, %v1709
    %v1722 = vadd.f32 %v1720, 1e-05
    %v1723 = vadd.f32 %v1721, 1e-05
    %v1724 = vrsqrt.pop %v1722
    %v1725 = vrsqrt.pop %v1723
    %v1726 = vmul.f32 %v1712, %v1724
    %v1727 = vmul.f32 %v1713, %v1725
    %v1728 = vlaneseq
    %v1729 = vshrl.u32 %v1728, 7
    %v1730 = vsub.s32 6, %v1729
    %v1731 = vrot.slane %v143, %v1730
    %v1732 = vmul.f32 %v1726, %v1731
    %v1733 = vmul.f32 %v1727, %v1731
    %v1734 = vlaneseq
    %v1735 = vshrl.u32 %v1734, 7
    %v1736 = vsub.s32 7, %v1735
    %v1737 = vrot.slane %v143, %v1736
    %v1738 = vadd.f32 %v1732, %v1737
    %v1739 = vadd.f32 %v1733, %v1737
    %v1740 = vpack.c.bf16 %v1739, %v1738
    %v1741 = vld [vmem:[#allocation8] sm:$0xff]
    %v1742 = vld [vmem:[#allocation8 + $0x8] sm:$0xff]
    %v1743 = vld [vmem:[#allocation8 + $0x10] sm:$0xff]
    %v1744 = vld [vmem:[#allocation8 + $0x18] sm:$0xff]
    %v1745 = vld [vmem:[#allocation8 + $0x20] sm:$0xff]
    %v1746 = vld [vmem:[#allocation8 + $0x28] sm:$0xff]
    %v1747 = vld [vmem:[#allocation8 + $0x30] sm:$0xff]
    %v1748 = vld [vmem:[#allocation8 + $0x38] sm:$0xff]
    %v1749 = vld [vmem:[#allocation8 + $0x40] sm:$0xff]
    %v1750 = vld [vmem:[#allocation8 + $0x48] sm:$0xff]
    %v1751 = vld [vmem:[#allocation8 + $0x50] sm:$0xff]
    %v1752 = vld [vmem:[#allocation8 + $0x58] sm:$0xff]
    %v1753 = vld [vmem:[#allocation8 + $0x60] sm:$0xff]
    %v1754 = vld [vmem:[#allocation8 + $0x68] sm:$0xff]
    %v1755 = vld [vmem:[#allocation8 + $0x70] sm:$0xff]
    %v1756 = vld [vmem:[#allocation8 + $0x78] sm:$0xff]
    %v1757 = vlaneseq
    %v1758 = vshrl.u32 %v1757, 7
    %v1759 = vsub.s32 1, %v1758
    %v1760 = vrot.slane %v143, %v1759
    %v1761 = vlaneseq
    %v1762 = vshrl.u32 %v1761, 7
    %v1763 = vsub.s32 1, %v1762
    %v1764 = vrot.slane %v144, %v1763
    %v1781 = vunpack.c.l.b16 %v1741
    %v1782 = vunpack.c.h.b16 %v1741
    %v1783 = vunpack.c.l.b16 %v1742
    %v1784 = vunpack.c.h.b16 %v1742
    %v1785 = vunpack.c.l.b16 %v1743
    %v1786 = vunpack.c.h.b16 %v1743
    %v1787 = vunpack.c.l.b16 %v1744
    %v1788 = vunpack.c.h.b16 %v1744
    %v1789 = vunpack.c.l.b16 %v1745
    %v1790 = vunpack.c.h.b16 %v1745
    %v1791 = vunpack.c.l.b16 %v1746
    %v1792 = vunpack.c.h.b16 %v1746
    %v1793 = vunpack.c.l.b16 %v1747
    %v1794 = vunpack.c.h.b16 %v1747
    %v1795 = vunpack.c.l.b16 %v1748
    %v1796 = vunpack.c.h.b16 %v1748
    %v1797 = vunpack.c.l.b16 %v1749
    %v1798 = vunpack.c.h.b16 %v1749
    %v1799 = vunpack.c.l.b16 %v1750
    %v1800 = vunpack.c.h.b16 %v1750
    %v1801 = vunpack.c.l.b16 %v1751
    %v1802 = vunpack.c.h.b16 %v1751
    %v1803 = vunpack.c.l.b16 %v1752
    %v1804 = vunpack.c.h.b16 %v1752
    %v1805 = vunpack.c.l.b16 %v1753
    %v1806 = vunpack.c.h.b16 %v1753
    %v1807 = vunpack.c.l.b16 %v1754
    %v1808 = vunpack.c.h.b16 %v1754
    %v1809 = vunpack.c.l.b16 %v1755
    %v1810 = vunpack.c.h.b16 %v1755
    %v1811 = vunpack.c.l.b16 %v1756
    %v1812 = vunpack.c.h.b16 %v1756
    %v1813 = vpack.c.b16 %v1783, %v1781
    %v1814 = vpack.c.b16 %v1784, %v1782
    %v1815 = vpack.c.b16 %v1787, %v1785
    %v1816 = vpack.c.b16 %v1788, %v1786
    %v1817 = vpack.c.b16 %v1791, %v1789
    %v1818 = vpack.c.b16 %v1792, %v1790
    %v1819 = vpack.c.b16 %v1795, %v1793
    %v1820 = vpack.c.b16 %v1796, %v1794
    %v1821 = vpack.c.b16 %v1799, %v1797
    %v1822 = vpack.c.b16 %v1800, %v1798
    %v1823 = vpack.c.b16 %v1803, %v1801
    %v1824 = vpack.c.b16 %v1804, %v1802
    %v1825 = vpack.c.b16 %v1807, %v1805
    %v1826 = vpack.c.b16 %v1808, %v1806
    %v1827 = vpack.c.b16 %v1811, %v1809
    %v1828 = vpack.c.b16 %v1812, %v1810
    %1845 = vmatprep.subr.bf16.mxu0 %v1814
    %1846 = vmatpush1.bf16.msra.mxu0 %v1813
    %1847 = vmatprep.subr.bf16.mxu0 %v1816
    %1848 = vmatpush1.bf16.msra.mxu0 %v1815
    %1849 = vmatprep.subr.bf16.mxu0 %v1818
    %1850 = vmatpush1.bf16.msra.mxu0 %v1817
    %1851 = vmatprep.subr.bf16.mxu0 %v1820
    %1852 = vmatpush1.bf16.msra.mxu0 %v1819
    %1853 = vmatprep.subr.bf16.mxu0 %v1822
    %1854 = vmatpush1.bf16.msra.mxu0 %v1821
    %1855 = vmatprep.subr.bf16.mxu0 %v1824
    %1856 = vmatpush1.bf16.msra.mxu0 %v1823
    %1857 = vmatprep.subr.bf16.mxu0 %v1826
    %1858 = vmatpush1.bf16.msra.mxu0 %v1825
    %1859 = vmatprep.subr.bf16.mxu0 %v1828
    %1860 = vmatpush1.bf16.msra.mxu0 %v1827
    %1861 = vmatprep.subr.bf16.mxu0 0
    %1862 = vmatpush1.bf16.msra.mxu0 0
    %1863 = vmatprep.subr.bf16.mxu0 0
    %1864 = vmatpush1.bf16.msra.mxu0 0
    %1865 = vmatprep.subr.bf16.mxu0 0
    %1866 = vmatpush1.bf16.msra.mxu0 0
    %1867 = vmatprep.subr.bf16.mxu0 0
    %1868 = vmatpush1.bf16.msra.mxu0 0
    %1869 = vmatprep.subr.bf16.mxu0 0
    %1870 = vmatpush1.bf16.msra.mxu0 0
    %1871 = vmatprep.subr.bf16.mxu0 0
    %1872 = vmatpush1.bf16.msra.mxu0 0
    %1873 = vmatprep.subr.bf16.mxu0 0
    %1874 = vmatpush1.bf16.msra.mxu0 0
    %1875 = vmatprep.subr.bf16.mxu0 0
    %1876 = vmatpush1.bf16.msra.mxu0 0
    %1877 = vmatprep.mubr.bf16.mxu0 0
    %1878 = vmatmul.mubr.bf16.gmra.mrb[0].mxu0 %v1740
    %v1879 = vpop.f32.mrb[0].mxu0
    %v1880 = vadd.f32 %v1760, %v1879
    %v1881 = vpop.f32.mrb[0].mxu0
    %v1882 = vadd.f32 %v1764, %v1881
    %v1883 = vpop.f32.mrb[0].mxu0
    %v1884 = vadd.f32 %v1760, %v1883
    %v1885 = vpop.f32.mrb[0].mxu0
    %v1886 = vadd.f32 %v1764, %v1885
    %1887 = vdwg.mxu0
    %v1888 = vmax.f32 %v1880, 0.0
    %v1889 = vmax.f32 %v1882, 0.0
    %v1890 = vmax.f32 %v1884, 0.0
    %v1891 = vmax.f32 %v1886, 0.0
    %v1892 = vpack.c.bf16 %v1890, %v1888
    %v1893 = vpack.c.bf16 %v1891, %v1889
    %v1894 = vld [vmem:[#allocation10] sm:$0xf]
    %v1895 = vld [vmem:[#allocation10 + $0x4] sm:$0xf]
    %v1896 = vld [vmem:[#allocation10 + $0x8] sm:$0xf]
    %v1897 = vld [vmem:[#allocation10 + $0xc] sm:$0xf]
    %v1898 = vld [vmem:[#allocation10 + $0x10] sm:$0xf]
    %v1899 = vld [vmem:[#allocation10 + $0x14] sm:$0xf]
    %v1900 = vld [vmem:[#allocation10 + $0x18] sm:$0xf]
    %v1901 = vld [vmem:[#allocation10 + $0x1c] sm:$0xf]
    %v1902 = vld [vmem:[#allocation10 + $0x20] sm:$0xf]
    %v1903 = vld [vmem:[#allocation10 + $0x24] sm:$0xf]
    %v1904 = vld [vmem:[#allocation10 + $0x28] sm:$0xf]
    %v1905 = vld [vmem:[#allocation10 + $0x2c] sm:$0xf]
    %v1906 = vld [vmem:[#allocation10 + $0x30] sm:$0xf]
    %v1907 = vld [vmem:[#allocation10 + $0x34] sm:$0xf]
    %v1908 = vld [vmem:[#allocation10 + $0x38] sm:$0xf]
    %v1909 = vld [vmem:[#allocation10 + $0x3c] sm:$0xf]
    %v1910 = vld [vmem:[#allocation10 + $0x40] sm:$0xf]
    %v1911 = vld [vmem:[#allocation10 + $0x44] sm:$0xf]
    %v1912 = vld [vmem:[#allocation10 + $0x48] sm:$0xf]
    %v1913 = vld [vmem:[#allocation10 + $0x4c] sm:$0xf]
    %v1914 = vld [vmem:[#allocation10 + $0x50] sm:$0xf]
    %v1915 = vld [vmem:[#allocation10 + $0x54] sm:$0xf]
    %v1916 = vld [vmem:[#allocation10 + $0x58] sm:$0xf]
    %v1917 = vld [vmem:[#allocation10 + $0x5c] sm:$0xf]
    %v1918 = vld [vmem:[#allocation10 + $0x60] sm:$0xf]
    %v1919 = vld [vmem:[#allocation10 + $0x64] sm:$0xf]
    %v1920 = vld [vmem:[#allocation10 + $0x68] sm:$0xf]
    %v1921 = vld [vmem:[#allocation10 + $0x6c] sm:$0xf]
    %v1922 = vld [vmem:[#allocation10 + $0x70] sm:$0xf]
    %v1923 = vld [vmem:[#allocation10 + $0x74] sm:$0xf]
    %v1924 = vld [vmem:[#allocation10 + $0x78] sm:$0xf]
    %v1925 = vld [vmem:[#allocation10 + $0x7c] sm:$0xf]
    %v1926 = vlaneseq
    %v1927 = vshrl.u32 %v1926, 7
    %v1928 = vsub.s32 4, %v1927
    %v1929 = vrot.slane %v143, %v1928
    %v1962 = vunpack.c.l.b16 %v1894
    %v1963 = vunpack.c.l.b16 %v1895
    %v1964 = vunpack.c.l.b16 %v1896
    %v1965 = vunpack.c.l.b16 %v1897
    %v1966 = vunpack.c.l.b16 %v1898
    %v1967 = vunpack.c.l.b16 %v1899
    %v1968 = vunpack.c.l.b16 %v1900
    %v1969 = vunpack.c.l.b16 %v1901
    %v1970 = vunpack.c.l.b16 %v1902
    %v1971 = vunpack.c.l.b16 %v1903
    %v1972 = vunpack.c.l.b16 %v1904
    %v1973 = vunpack.c.l.b16 %v1905
    %v1974 = vunpack.c.l.b16 %v1906
    %v1975 = vunpack.c.l.b16 %v1907
    %v1976 = vunpack.c.l.b16 %v1908
    %v1977 = vunpack.c.l.b16 %v1909
    %v1978 = vunpack.c.l.b16 %v1910
    %v1979 = vunpack.c.l.b16 %v1911
    %v1980 = vunpack.c.l.b16 %v1912
    %v1981 = vunpack.c.l.b16 %v1913
    %v1982 = vunpack.c.l.b16 %v1914
    %v1983 = vunpack.c.l.b16 %v1915
    %v1984 = vunpack.c.l.b16 %v1916
    %v1985 = vunpack.c.l.b16 %v1917
    %v1986 = vunpack.c.l.b16 %v1918
    %v1987 = vunpack.c.l.b16 %v1919
    %v1988 = vunpack.c.l.b16 %v1920
    %v1989 = vunpack.c.l.b16 %v1921
    %v1990 = vunpack.c.l.b16 %v1922
    %v1991 = vunpack.c.l.b16 %v1923
    %v1992 = vunpack.c.l.b16 %v1924
    %v1993 = vunpack.c.l.b16 %v1925
    %v1994 = vpack.c.b16 %v1963, %v1962
    %v1995 = vpack.c.b16 %v1965, %v1964
    %v1996 = vpack.c.b16 %v1967, %v1966
    %v1997 = vpack.c.b16 %v1969, %v1968
    %v1998 = vpack.c.b16 %v1971, %v1970
    %v1999 = vpack.c.b16 %v1973, %v1972
    %v2000 = vpack.c.b16 %v1975, %v1974
    %v2001 = vpack.c.b16 %v1977, %v1976
    %v2002 = vpack.c.b16 %v1979, %v1978
    %v2003 = vpack.c.b16 %v1981, %v1980
    %v2004 = vpack.c.b16 %v1983, %v1982
    %v2005 = vpack.c.b16 %v1985, %v1984
    %v2006 = vpack.c.b16 %v1987, %v1986
    %v2007 = vpack.c.b16 %v1989, %v1988
    %v2008 = vpack.c.b16 %v1991, %v1990
    %v2009 = vpack.c.b16 %v1993, %v1992
    %2026 = vmatprep.subr.bf16.mxu0 0
    %2027 = vmatpush1.bf16.msra.mxu0 %v1994
    %2028 = vmatprep.subr.bf16.mxu0 0
    %2029 = vmatpush1.bf16.msra.mxu0 %v1995
    %2030 = vmatprep.subr.bf16.mxu0 0
    %2031 = vmatpush1.bf16.msra.mxu0 %v1996
    %2032 = vmatprep.subr.bf16.mxu0 0
    %2033 = vmatpush1.bf16.msra.mxu0 %v1997
    %2034 = vmatprep.subr.bf16.mxu0 0
    %2035 = vmatpush1.bf16.msra.mxu0 %v1998
    %2036 = vmatprep.subr.bf16.mxu0 0
    %2037 = vmatpush1.bf16.msra.mxu0 %v1999
    %2038 = vmatprep.subr.bf16.mxu0 0
    %2039 = vmatpush1.bf16.msra.mxu0 %v2000
    %2040 = vmatprep.subr.bf16.mxu0 0
    %2041 = vmatpush1.bf16.msra.mxu0 %v2001
    %2042 = vmatprep.subr.bf16.mxu0 0
    %2043 = vmatpush1.bf16.msra.mxu0 %v2002
    %2044 = vmatprep.subr.bf16.mxu0 0
    %2045 = vmatpush1.bf16.msra.mxu0 %v2003
    %2046 = vmatprep.subr.bf16.mxu0 0
    %2047 = vmatpush1.bf16.msra.mxu0 %v2004
    %2048 = vmatprep.subr.bf16.mxu0 0
    %2049 = vmatpush1.bf16.msra.mxu0 %v2005
    %2050 = vmatprep.subr.bf16.mxu0 0
    %2051 = vmatpush1.bf16.msra.mxu0 %v2006
    %2052 = vmatprep.subr.bf16.mxu0 0
    %2053 = vmatpush1.bf16.msra.mxu0 %v2007
    %2054 = vmatprep.subr.bf16.mxu0 0
    %2055 = vmatpush1.bf16.msra.mxu0 %v2008
    %2056 = vmatprep.subr.bf16.mxu0 0
    %2057 = vmatpush1.bf16.msra.mxu0 %v2009
    %2058 = vmatprep.mubr.bf16.mxu0 %v1893
    %2059 = vmatmul.mubr.bf16.gmra.mrb[0].mxu0 %v1892
    %v2060 = vpop.f32.mrb[0].mxu0
    %v2061 = vadd.f32 %v1929, %v2060
    %v2062 = vpop.f32.mrb[0].mxu0
    %v2063 = vpop.f32.mrb[0].mxu0
    %v2064 = vadd.f32 %v1929, %v2063
    %v2065 = vpop.f32.mrb[0].mxu0
    %2066 = vdwg.mxu0
    %v2067 = vadd.f32 %v1738, %v2061
    %v2068 = vadd.f32 %v1739, %v2064
    %2069 = vadd.xlane.f32.xlu0 %v2067
    %v2070 = vpop.xlane.xlu0 %2069
    %2071 = vadd.xlane.f32.xlu0 %v2068
    %v2072 = vpop.xlane.xlu0 %2071
    %v2073 = vmul.f32 %v2070, %v1709
    %v2074 = vmul.f32 %v2072, %v1709
    %v2075 = vsub.f32 %v2067, %v2073
    %v2076 = vsub.f32 %v2068, %v2074
    %v2077 = vmul.f32 %v2075, %v2075
    %v2078 = vmul.f32 %v2076, %v2076
    %2079 = vadd.xlane.f32.xlu0 %v2077
    %v2080 = vpop.xlane.xlu0 %2079
    %2081 = vadd.xlane.f32.xlu0 %v2078
    %v2082 = vpop.xlane.xlu0 %2081
    %v2083 = vmul.f32 %v2080, %v1709
    %v2084 = vmul.f32 %v2082, %v1709
    %v2085 = vadd.f32 %v2083, 1e-05
    %v2086 = vadd.f32 %v2084, 1e-05
    %v2087 = vrsqrt.pop %v2085
    %v2088 = vrsqrt.pop %v2086
    %v2089 = vmul.f32 %v2075, %v2087
    %v2090 = vmul.f32 %v2076, %v2088
    %v2091 = vlaneseq
    %v2092 = vshrl.u32 %v2091, 7
    %v2093 = vsub.s32 0, %v2092
    %v2094 = vrot.slane %v146, %v2093
    %v2095 = vmul.f32 %v2089, %v2094
    %v2096 = vmul.f32 %v2090, %v2094
    %v2097 = vlaneseq
    %v2098 = vshrl.u32 %v2097, 7
    %v2099 = vsub.s32 1, %v2098
    %v2100 = vrot.slane %v146, %v2099
    %v2101 = vadd.f32 %v2095, %v2100
    %v2102 = vadd.f32 %v2096, %v2100
    %v2103 = vpack.c.bf16 %v2102, %v2101
    %v2104 = vld [vmem:[#allocation11] sm:$0xff]
    %v2105 = vld [vmem:[#allocation11 + $0x8] sm:$0xff]
    %v2106 = vld [vmem:[#allocation11 + $0x10] sm:$0xff]
    %v2107 = vld [vmem:[#allocation11 + $0x18] sm:$0xff]
    %v2108 = vld [vmem:[#allocation11 + $0x20] sm:$0xff]
    %v2109 = vld [vmem:[#allocation11 + $0x28] sm:$0xff]
    %v2110 = vld [vmem:[#allocation11 + $0x30] sm:$0xff]
    %v2111 = vld [vmem:[#allocation11 + $0x38] sm:$0xff]
    %v2112 = vld [vmem:[#allocation11 + $0x40] sm:$0xff]
    %v2113 = vld [vmem:[#allocation11 + $0x48] sm:$0xff]
    %v2114 = vld [vmem:[#allocation11 + $0x50] sm:$0xff]
    %v2115 = vld [vmem:[#allocation11 + $0x58] sm:$0xff]
    %v2116 = vld [vmem:[#allocation11 + $0x60] sm:$0xff]
    %v2117 = vld [vmem:[#allocation11 + $0x68] sm:$0xff]
    %v2118 = vld [vmem:[#allocation11 + $0x70] sm:$0xff]
    %v2119 = vld [vmem:[#allocation11 + $0x78] sm:$0xff]
    %v2120 = vlaneseq
    %v2121 = vshrl.u32 %v2120, 7
    %v2122 = vsub.s32 2, %v2121
    %v2123 = vrot.slane %v143, %v2122
    %v2124 = vlaneseq
    %v2125 = vshrl.u32 %v2124, 7
    %v2126 = vsub.s32 2, %v2125
    %v2127 = vrot.slane %v144, %v2126
    %v2144 = vunpack.c.l.b16 %v2104
    %v2145 = vunpack.c.h.b16 %v2104
    %v2146 = vunpack.c.l.b16 %v2105
    %v2147 = vunpack.c.h.b16 %v2105
    %v2148 = vunpack.c.l.b16 %v2106
    %v2149 = vunpack.c.h.b16 %v2106
    %v2150 = vunpack.c.l.b16 %v2107
    %v2151 = vunpack.c.h.b16 %v2107
    %v2152 = vunpack.c.l.b16 %v2108
    %v2153 = vunpack.c.h.b16 %v2108
    %v2154 = vunpack.c.l.b16 %v2109
    %v2155 = vunpack.c.h.b16 %v2109
    %v2156 = vunpack.c.l.b16 %v2110
    %v2157 = vunpack.c.h.b16 %v2110
    %v2158 = vunpack.c.l.b16 %v2111
    %v2159 = vunpack.c.h.b16 %v2111
    %v2160 = vunpack.c.l.b16 %v2112
    %v2161 = vunpack.c.h.b16 %v2112
    %v2162 = vunpack.c.l.b16 %v2113
    %v2163 = vunpack.c.h.b16 %v2113
    %v2164 = vunpack.c.l.b16 %v2114
    %v2165 = vunpack.c.h.b16 %v2114
    %v2166 = vunpack.c.l.b16 %v2115
    %v2167 = vunpack.c.h.b16 %v2115
    %v2168 = vunpack.c.l.b16 %v2116
    %v2169 = vunpack.c.h.b16 %v2116
    %v2170 = vunpack.c.l.b16 %v2117
    %v2171 = vunpack.c.h.b16 %v2117
    %v2172 = vunpack.c.l.b16 %v2118
    %v2173 = vunpack.c.h.b16 %v2118
    %v2174 = vunpack.c.l.b16 %v2119
    %v2175 = vunpack.c.h.b16 %v2119
    %v2176 = vpack.c.b16 %v2146, %v2144
    %v2177 = vpack.c.b16 %v2147, %v2145
    %v2178 = vpack.c.b16 %v2150, %v2148
    %v2179 = vpack.c.b16 %v2151, %v2149
    %v2180 = vpack.c.b16 %v2154, %v2152
    %v2181 = vpack.c.b16 %v2155, %v2153
    %v2182 = vpack.c.b16 %v2158, %v2156
    %v2183 = vpack.c.b16 %v2159, %v2157
    %v2184 = vpack.c.b16 %v2162, %v2160
    %v2185 = vpack.c.b16 %v2163, %v2161
    %v2186 = vpack.c.b16 %v2166, %v2164
    %v2187 = vpack.c.b16 %v2167, %v2165
    %v2188 = vpack.c.b16 %v2170, %v2168
    %v2189 = vpack.c.b16 %v2171, %v2169
    %v2190 = vpack.c.b16 %v2174, %v2172
    %v2191 = vpack.c.b16 %v2175, %v2173
    %2208 = vmatprep.subr.bf16.mxu0 %v2177
    %2209 = vmatpush1.bf16.msra.mxu0 %v2176
    %2210 = vmatprep.subr.bf16.mxu0 %v2179
    %2211 = vmatpush1.bf16.msra.mxu0 %v2178
    %2212 = vmatprep.subr.bf16.mxu0 %v2181
    %2213 = vmatpush1.bf16.msra.mxu0 %v2180
    %2214 = vmatprep.subr.bf16.mxu0 %v2183
    %2215 = vmatpush1.bf16.msra.mxu0 %v2182
    %2216 = vmatprep.subr.bf16.mxu0 %v2185
    %2217 = vmatpush1.bf16.msra.mxu0 %v2184
    %2218 = vmatprep.subr.bf16.mxu0 %v2187
    %2219 = vmatpush1.bf16.msra.mxu0 %v2186
    %2220 = vmatprep.subr.bf16.mxu0 %v2189
    %2221 = vmatpush1.bf16.msra.mxu0 %v2188
    %2222 = vmatprep.subr.bf16.mxu0 %v2191
    %2223 = vmatpush1.bf16.msra.mxu0 %v2190
    %2224 = vmatprep.subr.bf16.mxu0 0
    %2225 = vmatpush1.bf16.msra.mxu0 0
    %2226 = vmatprep.subr.bf16.mxu0 0
    %2227 = vmatpush1.bf16.msra.mxu0 0
    %2228 = vmatprep.subr.bf16.mxu0 0
    %2229 = vmatpush1.bf16.msra.mxu0 0
    %2230 = vmatprep.subr.bf16.mxu0 0
    %2231 = vmatpush1.bf16.msra.mxu0 0
    %2232 = vmatprep.subr.bf16.mxu0 0
    %2233 = vmatpush1.bf16.msra.mxu0 0
    %2234 = vmatprep.subr.bf16.mxu0 0
    %2235 = vmatpush1.bf16.msra.mxu0 0
    %2236 = vmatprep.subr.bf16.mxu0 0
    %2237 = vmatpush1.bf16.msra.mxu0 0
    %2238 = vmatprep.subr.bf16.mxu0 0
    %2239 = vmatpush1.bf16.msra.mxu0 0
    %2240 = vmatprep.mubr.bf16.mxu0 0
    %2241 = vmatmul.mubr.bf16.gmra.mrb[0].mxu0 %v2103
    %v2242 = vpop.f32.mrb[0].mxu0
    %v2243 = vadd.f32 %v2123, %v2242
    %v2244 = vpop.f32.mrb[0].mxu0
    %v2245 = vadd.f32 %v2127, %v2244
    %v2246 = vpop.f32.mrb[0].mxu0
    %v2247 = vadd.f32 %v2123, %v2246
    %v2248 = vpop.f32.mrb[0].mxu0
    %v2249 = vadd.f32 %v2127, %v2248
    %2250 = vdwg.mxu0
    %v2251 = vmax.f32 %v2243, 0.0
    %v2252 = vmax.f32 %v2245, 0.0
    %v2253 = vmax.f32 %v2247, 0.0
    %v2254 = vmax.f32 %v2249, 0.0
    %v2255 = vpack.c.bf16 %v2253, %v2251
    %v2256 = vpack.c.bf16 %v2254, %v2252
    %v2257 = vld [vmem:[#allocation13] sm:$0xf]
    %v2258 = vld [vmem:[#allocation13 + $0x4] sm:$0xf]
    %v2259 = vld [vmem:[#allocation13 + $0x8] sm:$0xf]
    %v2260 = vld [vmem:[#allocation13 + $0xc] sm:$0xf]
    %v2261 = vld [vmem:[#allocation13 + $0x10] sm:$0xf]
    %v2262 = vld [vmem:[#allocation13 + $0x14] sm:$0xf]
    %v2263 = vld [vmem:[#allocation13 + $0x18] sm:$0xf]
    %v2264 = vld [vmem:[#allocation13 + $0x1c] sm:$0xf]
    %v2265 = vld [vmem:[#allocation13 + $0x20] sm:$0xf]
    %v2266 = vld [vmem:[#allocation13 + $0x24] sm:$0xf]
    %v2267 = vld [vmem:[#allocation13 + $0x28] sm:$0xf]
    %v2268 = vld [vmem:[#allocation13 + $0x2c] sm:$0xf]
    %v2269 = vld [vmem:[#allocation13 + $0x30] sm:$0xf]
    %v2270 = vld [vmem:[#allocation13 + $0x34] sm:$0xf]
    %v2271 = vld [vmem:[#allocation13 + $0x38] sm:$0xf]
    %v2272 = vld [vmem:[#allocation13 + $0x3c] sm:$0xf]
    %v2273 = vld [vmem:[#allocation13 + $0x40] sm:$0xf]
    %v2274 = vld [vmem:[#allocation13 + $0x44] sm:$0xf]
    %v2275 = vld [vmem:[#allocation13 + $0x48] sm:$0xf]
    %v2276 = vld [vmem:[#allocation13 + $0x4c] sm:$0xf]
    %v2277 = vld [vmem:[#allocation13 + $0x50] sm:$0xf]
    %v2278 = vld [vmem:[#allocation13 + $0x54] sm:$0xf]
    %v2279 = vld [vmem:[#allocation13 + $0x58] sm:$0xf]
    %v2280 = vld [vmem:[#allocation13 + $0x5c] sm:$0xf]
    %v2281 = vld [vmem:[#allocation13 + $0x60] sm:$0xf]
    %v2282 = vld [vmem:[#allocation13 + $0x64] sm:$0xf]
    %v2283 = vld [vmem:[#allocation13 + $0x68] sm:$0xf]
    %v2284 = vld [vmem:[#allocation13 + $0x6c] sm:$0xf]
    %v2285 = vld [vmem:[#allocation13 + $0x70] sm:$0xf]
    %v2286 = vld [vmem:[#allocation13 + $0x74] sm:$0xf]
    %v2287 = vld [vmem:[#allocation13 + $0x78] sm:$0xf]
    %v2288 = vld [vmem:[#allocation13 + $0x7c] sm:$0xf]
    %v2289 = vlaneseq
    %v2290 = vshrl.u32 %v2289, 7
    %v2291 = vsub.s32 5, %v2290
    %v2292 = vrot.slane %v143, %v2291
    %v2325 = vunpack.c.l.b16 %v2257
    %v2326 = vunpack.c.l.b16 %v2258
    %v2327 = vunpack.c.l.b16 %v2259
    %v2328 = vunpack.c.l.b16 %v2260
    %v2329 = vunpack.c.l.b16 %v2261
    %v2330 = vunpack.c.l.b16 %v2262
    %v2331 = vunpack.c.l.b16 %v2263
    %v2332 = vunpack.c.l.b16 %v2264
    %v2333 = vunpack.c.l.b16 %v2265
    %v2334 = vunpack.c.l.b16 %v2266
    %v2335 = vunpack.c.l.b16 %v2267
    %v2336 = vunpack.c.l.b16 %v2268
    %v2337 = vunpack.c.l.b16 %v2269
    %v2338 = vunpack.c.l.b16 %v2270
    %v2339 = vunpack.c.l.b16 %v2271
    %v2340 = vunpack.c.l.b16 %v2272
    %v2341 = vunpack.c.l.b16 %v2273
    %v2342 = vunpack.c.l.b16 %v2274
    %v2343 = vunpack.c.l.b16 %v2275
    %v2344 = vunpack.c.l.b16 %v2276
    %v2345 = vunpack.c.l.b16 %v2277
    %v2346 = vunpack.c.l.b16 %v2278
    %v2347 = vunpack.c.l.b16 %v2279
    %v2348 = vunpack.c.l.b16 %v2280
    %v2349 = vunpack.c.l.b16 %v2281
    %v2350 = vunpack.c.l.b16 %v2282
    %v2351 = vunpack.c.l.b16 %v2283
    %v2352 = vunpack.c.l.b16 %v2284
    %v2353 = vunpack.c.l.b16 %v2285
    %v2354 = vunpack.c.l.b16 %v2286
    %v2355 = vunpack.c.l.b16 %v2287
    %v2356 = vunpack.c.l.b16 %v2288
    %v2357 = vpack.c.b16 %v2326, %v2325
    %v2358 = vpack.c.b16 %v2328, %v2327
    %v2359 = vpack.c.b16 %v2330, %v2329
    %v2360 = vpack.c.b16 %v2332, %v2331
    %v2361 = vpack.c.b16 %v2334, %v2333
    %v2362 = vpack.c.b16 %v2336, %v2335
    %v2363 = vpack.c.b16 %v2338, %v2337
    %v2364 = vpack.c.b16 %v2340, %v2339
    %v2365 = vpack.c.b16 %v2342, %v2341
    %v2366 = vpack.c.b16 %v2344, %v2343
    %v2367 = vpack.c.b16 %v2346, %v2345
    %v2368 = vpack.c.b16 %v2348, %v2347
    %v2369 = vpack.c.b16 %v2350, %v2349
    %v2370 = vpack.c.b16 %v2352, %v2351
    %v2371 = vpack.c.b16 %v2354, %v2353
    %v2372 = vpack.c.b16 %v2356, %v2355
    %2389 = vmatprep.subr.bf16.mxu0 0
    %2390 = vmatpush1.bf16.msra.mxu0 %v2357
    %2391 = vmatprep.subr.bf16.mxu0 0
    %2392 = vmatpush1.bf16.msra.mxu0 %v2358
    %2393 = vmatprep.subr.bf16.mxu0 0
    %2394 = vmatpush1.bf16.msra.mxu0 %v2359
    %2395 = vmatprep.subr.bf16.mxu0 0
    %2396 = vmatpush1.bf16.msra.mxu0 %v2360
    %2397 = vmatprep.subr.bf16.mxu0 0
    %2398 = vmatpush1.bf16.msra.mxu0 %v2361
    %2399 = vmatprep.subr.bf16.mxu0 0
    %2400 = vmatpush1.bf16.msra.mxu0 %v2362
    %2401 = vmatprep.subr.bf16.mxu0 0
    %2402 = vmatpush1.bf16.msra.mxu0 %v2363
    %2403 = vmatprep.subr.bf16.mxu0 0
    %2404 = vmatpush1.bf16.msra.mxu0 %v2364
    %2405 = vmatprep.subr.bf16.mxu0 0
    %2406 = vmatpush1.bf16.msra.mxu0 %v2365
    %2407 = vmatprep.subr.bf16.mxu0 0
    %2408 = vmatpush1.bf16.msra.mxu0 %v2366
    %2409 = vmatprep.subr.bf16.mxu0 0
    %2410 = vmatpush1.bf16.msra.mxu0 %v2367
    %2411 = vmatprep.subr.bf16.mxu0 0
    %2412 = vmatpush1.bf16.msra.mxu0 %v2368
    %2413 = vmatprep.subr.bf16.mxu0 0
    %2414 = vmatpush1.bf16.msra.mxu0 %v2369
    %2415 = vmatprep.subr.bf16.mxu0 0
    %2416 = vmatpush1.bf16.msra.mxu0 %v2370
    %2417 = vmatprep.subr.bf16.mxu0 0
    %2418 = vmatpush1.bf16.msra.mxu0 %v2371
    %2419 = vmatprep.subr.bf16.mxu0 0
    %2420 = vmatpush1.bf16.msra.mxu0 %v2372
    %2421 = vmatprep.mubr.bf16.mxu0 %v2256
    %2422 = vmatmul.mubr.bf16.gmra.mrb[0].mxu0 %v2255
    %v2423 = vpop.f32.mrb[0].mxu0
    %v2424 = vadd.f32 %v2292, %v2423
    %v2425 = vpop.f32.mrb[0].mxu0
    %v2426 = vpop.f32.mrb[0].mxu0
    %v2427 = vadd.f32 %v2292, %v2426
    %v2428 = vpop.f32.mrb[0].mxu0
    %2429 = vdwg.mxu0
    %v2430 = vadd.f32 %v140, %v2424
    %v2431 = vadd.f32 %v141, %v2427
    %2432 = vadd.xlane.f32.xlu0 %v2430
    %v2433 = vpop.xlane.xlu0 %2432
    %2434 = vadd.xlane.f32.xlu0 %v2431
    %v2435 = vpop.xlane.xlu0 %2434
    %v2436 = vmul.f32 %v2433, %v1709
    %v2437 = vmul.f32 %v2435, %v1709
    %v2438 = vsub.f32 %v2430, %v2436
    %v2439 = vsub.f32 %v2431, %v2437
    %v2440 = vmul.f32 %v2438, %v2438
    %v2441 = vmul.f32 %v2439, %v2439
    %2442 = vadd.xlane.f32.xlu0 %v2440
    %v2443 = vpop.xlane.xlu0 %2442
    %2444 = vadd.xlane.f32.xlu0 %v2441
    %v2445 = vpop.xlane.xlu0 %2444
    %v2446 = vmul.f32 %v2443, %v1709
    %v2447 = vmul.f32 %v2445, %v1709
    %v2448 = vadd.f32 %v2446, 1e-05
    %v2449 = vadd.f32 %v2447, 1e-05
    %v2450 = vrsqrt.pop %v2448
    %v2451 = vrsqrt.pop %v2449
    %v2452 = vmul.f32 %v2438, %v2450
    %v2453 = vmul.f32 %v2439, %v2451
    %v2454 = vlaneseq
    %v2455 = vshrl.u32 %v2454, 7
    %v2456 = vsub.s32 2, %v2455
    %v2457 = vrot.slane %v146, %v2456
    %v2458 = vmul.f32 %v2452, %v2457
    %v2459 = vmul.f32 %v2453, %v2457
    %v2460 = vlaneseq
    %v2461 = vshrl.u32 %v2460, 7
    %v2462 = vsub.s32 3, %v2461
    %v2463 = vrot.slane %v146, %v2462
    %v2464 = vadd.f32 %v2458, %v2463
    %v2465 = vadd.f32 %v2459, %v2463
    %2466 = vst [vmem:[#allocation16] sm:$0xff] %v2464
    %2467 = vst [vmem:[#allocation16 + $0x8] sm:$0xff] %v2465
    // Predicated region
    $region66: #{tpu_custom_call.1} parent=1 // pred_check
      _
    $region67: #{tpu_custom_call.1} parent=1 // pred_check_branch
      %2469 = sbr.rel (0) target = $region69
    $region68: #{tpu_custom_call.1} parent=1 // pred_region
      %s2471 = ssub.s32 256, 256
      %2472 = vsyncadd [#allocation4], %s2471
      %s2473 = sshll.u32 [#allocation16], 4
      %s2474 = int_to_ptr.vmem [resolvable:$true] %s2473
      %2479 = dma.vmem_to_hbm [thread:$0]  %s2474, 256, %s8, [#allocation4], 128, 128, 8
    $region69: #{tpu_custom_call.1} parent=1 // pred_fallthru
      _
    // Predicated region
    $region70: #{tpu_custom_call.1} parent=1 // pred_check
      _
    $region71: #{tpu_custom_call.1} parent=1 // pred_check_branch
      %2481 = sbr.rel (0) target = $region73
    $region72: #{tpu_custom_call.1} parent=1 // pred_region
      %2482 = dma.done [#allocation4], 256
    $region73: #{tpu_custom_call.1} parent=1 // pred_fallthru
      _
    %2483 = vsyncpa [#allocation3], 1
    %2484 = vsyncpa [#allocation6], 1
    %2485 = vsyncpa [#allocation9], 1
    %2486 = vsyncpa [#allocation12], 1
    %2487 = vsyncpa [#allocation15], 1
    %2488 = vsyncpa [#allocation4], 1

</llo_original>
